<compile_context>
chip_gen: v5e
topology: v5e:2x2
jax: 0.10.0
libtpu: 0.0.40
codegen_flags: <defaults>
</compile_context>

<pallas_src>
import functools

import jax
import jax.numpy as jnp
from jax.experimental import pallas as pl
from jax.experimental.pallas import tpu as pltpu


def _round_up(x, m):
    return (x + m - 1) // m * m


def _decoder_kernel(T_chunk, Ep, Hp, Ap, Vp,
                    enc_ref, mask_ref, emb_ref, wl_ref, b_ref,
                    wq_ref, wc_ref, wo_ref, bo_ref, bos_ref,
                    logits_ref, ws_ref, preds_ref, ylp_ref,
                    x_scr, c_scr, oh_scr):
    B = x_scr.shape[0]
    NEG = jnp.float32(-1e9)

    # zero_state() + <bos> one-hot at the start of each batch block's decode
    @pl.when(pl.program_id(1) == 0)
    def _init():
        x_scr[...] = jnp.zeros_like(x_scr)
        c_scr[...] = jnp.zeros_like(c_scr)
        oh_scr[...] = bos_ref[...]

    @pl.loop(0, T_chunk)
    def _step(t):
        # embedding of previous prediction (or <bos>) via bf16 one-hot matmul
        emb = jnp.dot(oh_scr[...], emb_ref[...],
                      preferred_element_type=jnp.float32)              # (B, Ep)
        x_scr[:, :Ep] = emb.astype(jnp.bfloat16)

        # fused LSTMCell on [emb | dec_z | c]: single MXU launch.
        # (dropout_layer is identity in eval mode; b = b_ih + b_hh)
        gates = jnp.dot(x_scr[...], wl_ref[...],
                        preferred_element_type=jnp.float32) + b_ref[...]   # (B, 4Hp)
        i_g = jax.nn.sigmoid(gates[:, 0 * Hp:1 * Hp])
        f_g = jax.nn.sigmoid(gates[:, 1 * Hp:2 * Hp])
        g_g = jnp.tanh(gates[:, 2 * Hp:3 * Hp])
        o_g = jax.nn.sigmoid(gates[:, 3 * Hp:4 * Hp])
        c_new = f_g * c_scr[...] + i_g * g_g
        z_new = o_g * jnp.tanh(c_new)                                  # (B, Hp) f32
        c_scr[...] = c_new
        x_scr[:, Ep:Ep + Hp] = z_new.astype(jnp.bfloat16)

        # masked dot-product attention — both contractions on the MXU
        enc = enc_ref[...]                                             # (B, Te, Dp) bf16
        q = jnp.dot(z_new.astype(jnp.bfloat16), wq_ref[...],
                    preferred_element_type=jnp.float32)                # (B, Dp)
        e = jnp.einsum('bqd,btd->bqt',
                       q[:, None, :].astype(jnp.bfloat16), enc,
                       preferred_element_type=jnp.float32)[:, 0, :]    # (B, Te)
        e = jnp.where(mask_ref[...] > 0.5, e, NEG)
        e = e - jnp.max(e, axis=-1, keepdims=True)
        p = jnp.exp(e)
        w_att = p * pl.reciprocal(jnp.sum(p, axis=-1, keepdims=True),
                                  approx=True)                         # (B, Te)
        ctx_raw = jnp.einsum('bqt,btd->bqd',
                             w_att[:, None, :].astype(jnp.bfloat16), enc,
                             preferred_element_type=jnp.float32)[:, 0, :]  # (B, Dp)
        ctx = jnp.dot(ctx_raw.astype(jnp.bfloat16), wc_ref[...],
                      preferred_element_type=jnp.float32)              # (B, Ap)
        x_scr[:, Ep + Hp:] = ctx.astype(jnp.bfloat16)

        # output_layer on [dec_z | c] — single MXU launch
        logit = jnp.dot(x_scr[:, Ep:], wo_ref[...],
                        preferred_element_type=jnp.float32) + bo_ref[...]  # (B, Vp)

        # dense, lane-aligned time-major stores
        logits_ref[t] = logit
        ws_ref[t] = w_att

        # greedy argmax one-hot for the next embedding (min-index tie break)
        mx = jnp.max(logit, axis=-1, keepdims=True)
        iota = jax.lax.broadcasted_iota(jnp.int32, (B, Vp), 1)
        pred = jnp.min(jnp.where(logit == mx, iota, Vp), axis=-1, keepdims=True)
        oh_scr[...] = (iota == pred).astype(jnp.bfloat16)

    # chunk-end: batched prediction / gathered log-prob from the logits block
    # already resident in VMEM (ylp = logit[argmax] - lse = mx - lse).
    lg = logits_ref[...]                                               # (Tc, B, Vp)
    mx = jnp.max(lg, axis=-1, keepdims=True)
    iota3 = jax.lax.broadcasted_iota(jnp.int32, lg.shape, 2)
    pred = jnp.min(jnp.where(lg == mx, iota3, Vp), axis=-1)            # (Tc, B) i32
    ylp = -jnp.log(jnp.sum(jnp.exp(lg - mx), axis=-1))                 # (Tc, B) f32
    preds_ref[0] = pred.T
    ylp_ref[0] = ylp.T


def decoder_forward(enc_pad, enc_len, params, max_dec_timesteps):
    """Greedy decode (ys=None, sample=False). Returns (logits, ys_log_probs,
    prediction, ws) batch-major, matching Decoder.forward's inference path."""
    enc_pad = jnp.asarray(enc_pad, jnp.float32)
    enc_len = jnp.asarray(enc_len, jnp.int32)
    B, T_enc, D_enc = enc_pad.shape
    V, E = params["emb"].shape
    H = params["w_hh"].shape[0]
    A = params["w_c"].shape[1]
    T_dec = int(max_dec_timesteps)
    f32, bf16 = jnp.float32, jnp.bfloat16

    # lane/sublane aligned padded dims
    Vp, Ep, Hp, Ap = (_round_up(x, 128) for x in (V, E, H, A))
    Dp, T_enc_p = _round_up(D_enc, 128), _round_up(T_enc, 128)
    Bp = _round_up(B, 8)
    # two batch blocks when possible so megacore (v7x) can split them
    b_blk = Bp // 2 if (Bp >= 16 and Bp % 16 == 0) else Bp
    n_bblk = Bp // b_blk
    # chunk the decode axis so per-chunk output blocks stay small in VMEM
    bytes_per_step = b_blk * (Vp + T_enc_p) * 4
    t_chunk = max(8, min(64, (4 << 20) // bytes_per_step // 8 * 8))
    t_chunk = min(t_chunk, _round_up(T_dec, 8))
    T_dec_pad = _round_up(T_dec, t_chunk)
    n_chunks = T_dec_pad // t_chunk

    # ------------- padded / fused / bf16 operands -------------------------
    enc_p = jnp.zeros((Bp, T_enc_p, Dp), bf16).at[:B, :T_enc, :D_enc].set(
        enc_pad.astype(bf16))
    mask = jnp.zeros((Bp, T_enc_p), f32).at[:B, :T_enc].set(
        (jnp.arange(T_enc, dtype=jnp.int32)[None, :] < enc_len[:, None]).astype(f32))
    emb_w = jnp.zeros((Vp, Ep), f32).at[:V, :E].set(params["emb"]).astype(bf16)

    def pad_gate_cols(w):  # (R, 4H) -> (R, 4Hp), each i/f/g/o block zero-padded
        return jnp.concatenate(
            [jnp.pad(w[:, g * H:(g + 1) * H], ((0, 0), (0, Hp - H)))
             for g in range(4)], axis=1)

    w_ih = params["w_ih"]                   # (E + A, 4H); input order cat([emb, c])
    # fused LSTM weight over [emb | dec_z | c] (dec_z rows = w_hh)
    w_lstm = jnp.zeros((Ep + Hp + Ap, 4 * Hp), f32)
    w_lstm = w_lstm.at[:E].set(pad_gate_cols(w_ih[:E]))
    w_lstm = w_lstm.at[Ep:Ep + H].set(pad_gate_cols(params["w_hh"]))
    w_lstm = w_lstm.at[Ep + Hp:Ep + Hp + A].set(pad_gate_cols(w_ih[E:]))
    w_lstm = w_lstm.astype(bf16)
    b = pad_gate_cols(params["b"].reshape(1, 4 * H))        # (1, 4Hp) f32 (= b_ih+b_hh)

    w_q = jnp.zeros((Hp, Dp), f32).at[:H, :D_enc].set(params["w_q"]).astype(bf16)
    w_c = jnp.zeros((Dp, Ap), f32).at[:D_enc, :A].set(params["w_c"]).astype(bf16)
    # fused output weight over [dec_z | c]; padded vocab columns get -1e30 bias
    w_o = params["w_o"]
    w_out = jnp.zeros((Hp + Ap, Vp), f32)
    w_out = w_out.at[:H, :V].set(w_o[:H]).at[Hp:Hp + A, :V].set(w_o[H:]).astype(bf16)
    b_o = jnp.full((1, Vp), -1e30, f32).at[0, :V].set(params["b_o"])
    bos_oh = jnp.broadcast_to(
        (jnp.arange(Vp, dtype=jnp.int32)[None, :] == params["bos"]).astype(bf16),
        (Bp, Vp))

    kernel = functools.partial(_decoder_kernel, t_chunk, Ep, Hp, Ap, Vp)
    rep = lambda bi, ci: (0, 0)  # weights: resident, block index never changes

    grid_spec = pltpu.PrefetchScalarGridSpec(
        num_scalar_prefetch=0,
        grid=(n_bblk, n_chunks),
        in_specs=[
            pl.BlockSpec((b_blk, T_enc_p, Dp), lambda bi, ci: (bi, 0, 0)),   # enc
            pl.BlockSpec((b_blk, T_enc_p), lambda bi, ci: (bi, 0)),          # mask
            pl.BlockSpec((Vp, Ep), rep),                                     # embedding
            pl.BlockSpec((Ep + Hp + Ap, 4 * Hp), rep),                       # fused LSTM W
            pl.BlockSpec((1, 4 * Hp), rep),                                  # LSTM bias
            pl.BlockSpec((Hp, Dp), rep),                                     # w_q
            pl.BlockSpec((Dp, Ap), rep),                                     # w_c
            pl.BlockSpec((Hp + Ap, Vp), rep),                                # fused out W
            pl.BlockSpec((1, Vp), rep),                                      # out bias
            pl.BlockSpec((b_blk, Vp), lambda bi, ci: (bi, 0)),               # <bos> one-hot
        ],
        out_specs=(
            pl.BlockSpec((t_chunk, b_blk, Vp), lambda bi, ci: (ci, bi, 0)),      # logits
            pl.BlockSpec((t_chunk, b_blk, T_enc_p), lambda bi, ci: (ci, bi, 0)), # ws
            pl.BlockSpec((1, b_blk, t_chunk), lambda bi, ci: (ci, bi, 0)),       # preds
            pl.BlockSpec((1, b_blk, t_chunk), lambda bi, ci: (ci, bi, 0)),       # ylp
        ),
        scratch_shapes=[
            pltpu.VMEM((b_blk, Ep + Hp + Ap), bf16),  # [emb | dec_z | c] matmul operand
            pltpu.VMEM((b_blk, Hp), f32),             # dec_c (cell state, f32)
            pltpu.VMEM((b_blk, Vp), bf16),            # prev-prediction one-hot
        ],
    )

    out_shapes = (
        jax.ShapeDtypeStruct((T_dec_pad, Bp, Vp), f32),
        jax.ShapeDtypeStruct((T_dec_pad, Bp, T_enc_p), f32),
        jax.ShapeDtypeStruct((n_chunks, Bp, t_chunk), jnp.int32),
        jax.ShapeDtypeStruct((n_chunks, Bp, t_chunk), f32),
    )

    logits_tm, ws_tm, preds_cb, ylp_cb = pl.pallas_call(
        kernel,
        out_shape=out_shapes,
        grid_spec=grid_spec,
        compiler_params=pltpu.CompilerParams(
            dimension_semantics=("parallel", "arbitrary"),
            vmem_limit_bytes=48 << 20),  # headroom below v7x's 64 MiB physical VMEM
    )(enc_p, mask, emb_w, w_lstm, b, w_q, w_c, w_out, b_o, bos_oh)

    logits = jnp.transpose(logits_tm, (1, 0, 2))[:B, :T_dec, :V]
    ws = jnp.transpose(ws_tm, (1, 0, 2))[:B, :T_dec, :T_enc]
    prediction = jnp.transpose(preds_cb, (1, 0, 2)).reshape(Bp, T_dec_pad)[:B, :T_dec]
    ys_log_probs = jnp.transpose(ylp_cb, (1, 0, 2)).reshape(Bp, T_dec_pad)[:B, :T_dec]
    return logits, ys_log_probs, prediction, ws


def make_params(key, output_dim, embedding_dim, hidden_dim, att_odim, enc_dim,
                bos, eos, pad):
    ks = jax.random.split(key, 8)
    s = 0.2
    emb = s * jax.random.normal(ks[0], (output_dim, embedding_dim), jnp.float32)
    emb = emb.at[pad].set(0.0)  # padding_idx row is zero, as in nn.Embedding
    params = dict(
        bos=bos, eos=eos, pad=pad,
        emb=emb,
        # LSTMCell weights stored pre-transposed: (in_dim, 4H), (H, 4H); gate order i,f,g,o
        w_ih=s * jax.random.normal(ks[1], (embedding_dim + att_odim, 4 * hidden_dim), jnp.float32),
        w_hh=s * jax.random.normal(ks[2], (hidden_dim, 4 * hidden_dim), jnp.float32),
        b=s * jax.random.normal(ks[3], (4 * hidden_dim,), jnp.float32),  # b_ih + b_hh
        # attention (dot-product stand-in): query proj + context proj
        w_q=s * jax.random.normal(ks[4], (hidden_dim, enc_dim), jnp.float32),
        w_c=s * jax.random.normal(ks[5], (enc_dim, att_odim), jnp.float32),
        # output_layer: (H + att_odim, V)
        w_o=s * jax.random.normal(ks[6], (hidden_dim + att_odim, output_dim), jnp.float32),
        b_o=s * jax.random.normal(ks[7], (output_dim,), jnp.float32),
    )
    return params


if __name__ == "__main__":
    # small, forward-consistent shapes
    B, T_enc, D_enc = 2, 8, 16
    output_dim, embedding_dim, hidden_dim, att_odim = 16, 8, 16, 8
    bos, eos, pad = 1, 2, 0
    max_dec_timesteps = 6

    key = jax.random.PRNGKey(0)
    k_enc, k_par = jax.random.split(key)
    enc_pad = jax.random.normal(k_enc, (B, T_enc, D_enc), jnp.float32)
    enc_len = jnp.array([8, 5], dtype=jnp.int32)
    params = make_params(k_par, output_dim, embedding_dim, hidden_dim,
                         att_odim, D_enc, bos, eos, pad)

    logits, ys_log_probs, prediction, ws = decoder_forward(
        enc_pad, enc_len, params, max_dec_timesteps)
    jax.block_until_ready((logits, ys_log_probs, prediction, ws))

    assert logits.shape == (B, max_dec_timesteps, output_dim)
    assert ys_log_probs.shape == (B, max_dec_timesteps)
    assert prediction.shape == (B, max_dec_timesteps)
    assert ws.shape == (B, max_dec_timesteps, T_enc)
    assert bool(jnp.all(jnp.isfinite(logits)))
    assert bool(jnp.all(jnp.isfinite(ys_log_probs)))
    print("KERNEL_OK")
</pallas_src>

<mosaic_0001>
module attributes {stable_mosaic.version = 11 : i64} {
  func.func @_decoder_kernel(%arg0: i32, %arg1: i32, %arg2: memref<8x128x128xbf16, #tpu.memory_space<vmem>>, %arg3: memref<8x128xf32, #tpu.memory_space<vmem>>, %arg4: memref<128x128xbf16, #tpu.memory_space<vmem>>, %arg5: memref<384x512xbf16, #tpu.memory_space<vmem>>, %arg6: memref<1x512xf32, #tpu.memory_space<vmem>>, %arg7: memref<128x128xbf16, #tpu.memory_space<vmem>>, %arg8: memref<128x128xbf16, #tpu.memory_space<vmem>>, %arg9: memref<256x128xbf16, #tpu.memory_space<vmem>>, %arg10: memref<1x128xf32, #tpu.memory_space<vmem>>, %arg11: memref<8x128xbf16, #tpu.memory_space<vmem>>, %arg12: memref<8x8x128xf32, #tpu.memory_space<vmem>>, %arg13: memref<8x8x128xf32, #tpu.memory_space<vmem>>, %arg14: memref<1x8x8xi32, #tpu.memory_space<vmem>>, %arg15: memref<1x8x8xf32, #tpu.memory_space<vmem>>, %arg16: memref<8x384xbf16, #tpu.memory_space<vmem>>, %arg17: memref<8x128xf32, #tpu.memory_space<vmem>>, %arg18: memref<8x128xbf16, #tpu.memory_space<vmem>>) attributes {dimension_semantics = [#tpu.dimension_semantics<parallel>, #tpu.dimension_semantics<arbitrary>], iteration_bounds = array<i64: 1, 1>, scalar_prefetch = 0 : i64, scratch_operands = 3 : i64, tpu.core_type = #tpu.core_type<tc>, window_params = [{transform_indices = @transform_0, window_bounds = array<i64: 8, 128, 128>}, {transform_indices = @transform_1, window_bounds = array<i64: 8, 128>}, {pipeline_mode = #tpu.pipeline_mode<synchronous>, transform_indices = @transform_2, window_bounds = array<i64: 128, 128>}, {pipeline_mode = #tpu.pipeline_mode<synchronous>, transform_indices = @transform_3, window_bounds = array<i64: 384, 512>}, {pipeline_mode = #tpu.pipeline_mode<synchronous>, transform_indices = @transform_4, window_bounds = array<i64: 1, 512>}, {pipeline_mode = #tpu.pipeline_mode<synchronous>, transform_indices = @transform_5, window_bounds = array<i64: 128, 128>}, {pipeline_mode = #tpu.pipeline_mode<synchronous>, transform_indices = @transform_6, window_bounds = array<i64: 128, 128>}, {pipeline_mode = #tpu.pipeline_mode<synchronous>, transform_indices = @transform_7, window_bounds = array<i64: 256, 128>}, {pipeline_mode = #tpu.pipeline_mode<synchronous>, transform_indices = @transform_8, window_bounds = array<i64: 1, 128>}, {transform_indices = @transform_9, window_bounds = array<i64: 8, 128>}, {transform_indices = @transform_10, window_bounds = array<i64: 8, 8, 128>}, {transform_indices = @transform_11, window_bounds = array<i64: 8, 8, 128>}, {transform_indices = @transform_12, window_bounds = array<i64: 1, 8, 8>}, {transform_indices = @transform_13, window_bounds = array<i64: 1, 8, 8>}]} {
    %c0_i32 = arith.constant 0 : i32
    %0 = arith.cmpi eq, %arg1, %c0_i32 : i32
    %1 = arith.extui %0 : i1 to i32
    %c0_i32_0 = arith.constant 0 : i32
    %2 = arith.cmpi ne, %1, %c0_i32_0 : i32
    scf.if %2 {
      %cst_15 = arith.constant 0.000000e+00 : bf16
      %28 = vector.broadcast %cst_15 : bf16 to vector<8x384xbf16>
      %c0_16 = arith.constant 0 : index
      %c0_17 = arith.constant 0 : index
      %29 = vector.load %arg16[%c0_16, %c0_17] : memref<8x384xbf16, #tpu.memory_space<vmem>>, vector<8x384xbf16>
      tpu.vector_store %arg16[%c0_16, %c0_17], %28 {strides = array<i32>} : memref<8x384xbf16, #tpu.memory_space<vmem>>, vector<8x384xbf16>,
      %cst_18 = arith.constant 0.000000e+00 : f32
      %30 = vector.broadcast %cst_18 : f32 to vector<8x128xf32>
      %c0_19 = arith.constant 0 : index
      %c0_20 = arith.constant 0 : index
      %31 = vector.load %arg17[%c0_19, %c0_20] : memref<8x128xf32, #tpu.memory_space<vmem>>, vector<8x128xf32>
      tpu.vector_store %arg17[%c0_19, %c0_20], %30 {strides = array<i32>} : memref<8x128xf32, #tpu.memory_space<vmem>>, vector<8x128xf32>,
      %c0_21 = arith.constant 0 : index
      %c0_22 = arith.constant 0 : index
      %32 = vector.load %arg11[%c0_21, %c0_22] : memref<8x128xbf16, #tpu.memory_space<vmem>>, vector<8x128xbf16>
      %c0_23 = arith.constant 0 : index
      %c0_24 = arith.constant 0 : index
      %33 = vector.load %arg18[%c0_23, %c0_24] : memref<8x128xbf16, #tpu.memory_space<vmem>>, vector<8x128xbf16>
      tpu.vector_store %arg18[%c0_23, %c0_24], %32 {strides = array<i32>} : memref<8x128xbf16, #tpu.memory_space<vmem>>, vector<8x128xbf16>,
    } else {
    }
    %cst = arith.constant -1.000000e+09 : f32
    %c0_i32_1 = arith.constant 0 : i32
    %c8_i32 = arith.constant 8 : i32
    %3 = arith.addi %c0_i32_1, %c8_i32 : i32
    %c1_i32 = arith.constant 1 : i32
    scf.for %arg19 = %c0_i32_1 to %3 step %c1_i32  : i32 {
      %c1_i32_15 = arith.constant 1 : i32
      %28 = arith.muli %arg19, %c1_i32_15 : i32
      %c0_i32_16 = arith.constant 0 : i32
      %29 = arith.addi %c0_i32_16, %28 : i32
      %c0_17 = arith.constant 0 : index
      %c0_18 = arith.constant 0 : index
      %30 = vector.load %arg18[%c0_17, %c0_18] : memref<8x128xbf16, #tpu.memory_space<vmem>>, vector<8x128xbf16>
      %c0_19 = arith.constant 0 : index
      %c0_20 = arith.constant 0 : index
      %31 = vector.load %arg4[%c0_19, %c0_20] : memref<128x128xbf16, #tpu.memory_space<vmem>>, vector<128x128xbf16>
      %cst_21 = arith.constant dense<0.000000e+00> : vector<8x128xf32>
      %32 = tpu.matmul %30, %31, %cst_21 {dimension_numbers = #tpu.dot_dimension_numbers<[1], [0], [0], [1], [0, 0, 1, 1], [], []>} : vector<8x128xbf16>, vector<128x128xbf16>, vector<8x128xf32> -> vector<8x128xf32>
      %33 = arith.truncf %32 : vector<8x128xf32> to vector<8x128xbf16>
      %c0_22 = arith.constant 0 : index
      %c0_23 = arith.constant 0 : index
      %34 = vector.load %arg16[%c0_22, %c0_23] : memref<8x384xbf16, #tpu.memory_space<vmem>>, vector<8x128xbf16>
      tpu.vector_store %arg16[%c0_22, %c0_23], %33 {strides = array<i32>} : memref<8x384xbf16, #tpu.memory_space<vmem>>, vector<8x128xbf16>,
      %c0_24 = arith.constant 0 : index
      %c0_25 = arith.constant 0 : index
      %35 = vector.load %arg16[%c0_24, %c0_25] : memref<8x384xbf16, #tpu.memory_space<vmem>>, vector<8x384xbf16>
      %c0_26 = arith.constant 0 : index
      %c0_27 = arith.constant 0 : index
      %36 = vector.load %arg5[%c0_26, %c0_27] : memref<384x512xbf16, #tpu.memory_space<vmem>>, vector<384x512xbf16>
      %cst_28 = arith.constant dense<0.000000e+00> : vector<8x512xf32>
      %37 = tpu.matmul %35, %36, %cst_28 {dimension_numbers = #tpu.dot_dimension_numbers<[1], [0], [0], [1], [0, 0, 1, 1], [], []>} : vector<8x384xbf16>, vector<384x512xbf16>, vector<8x512xf32> -> vector<8x512xf32>
      %c0_29 = arith.constant 0 : index
      %c0_30 = arith.constant 0 : index
      %38 = vector.load %arg6[%c0_29, %c0_30] : memref<1x512xf32, #tpu.memory_space<vmem>>, vector<1x512xf32>
      %39 = vector.broadcast %38 : vector<1x512xf32> to vector<8x512xf32>
      %40 = arith.addf %37, %39 : vector<8x512xf32>
      %41 = vector.extract_strided_slice %40 {offsets = [0, 0], sizes = [8, 128], strides = [1, 1]} : vector<8x512xf32> to vector<8x128xf32>
      %42 = arith.negf %41 : vector<8x128xf32>
      %43 = math.exp %42 : vector<8x128xf32>
      %cst_31 = arith.constant 1.000000e+00 : f32
      %44 = vector.broadcast %cst_31 : f32 to vector<8x128xf32>
      %45 = arith.addf %44, %43 : vector<8x128xf32>
      %46 = arith.divf %44, %45 : vector<8x128xf32>
      %47 = vector.extract_strided_slice %40 {offsets = [0, 128], sizes = [8, 128], strides = [1, 1]} : vector<8x512xf32> to vector<8x128xf32>
      %48 = arith.negf %47 : vector<8x128xf32>
      %49 = math.exp %48 : vector<8x128xf32>
      %cst_32 = arith.constant 1.000000e+00 : f32
      %50 = vector.broadcast %cst_32 : f32 to vector<8x128xf32>
      %51 = arith.addf %50, %49 : vector<8x128xf32>
      %52 = arith.divf %50, %51 : vector<8x128xf32>
      %53 = vector.extract_strided_slice %40 {offsets = [0, 256], sizes = [8, 128], strides = [1, 1]} : vector<8x512xf32> to vector<8x128xf32>
      %54 = math.tanh %53 : vector<8x128xf32>
      %55 = vector.extract_strided_slice %40 {offsets = [0, 384], sizes = [8, 128], strides = [1, 1]} : vector<8x512xf32> to vector<8x128xf32>
      %56 = arith.negf %55 : vector<8x128xf32>
      %57 = math.exp %56 : vector<8x128xf32>
      %cst_33 = arith.constant 1.000000e+00 : f32
      %58 = vector.broadcast %cst_33 : f32 to vector<8x128xf32>
      %59 = arith.addf %58, %57 : vector<8x128xf32>
      %60 = arith.divf %58, %59 : vector<8x128xf32>
      %c0_34 = arith.constant 0 : index
      %c0_35 = arith.constant 0 : index
      %61 = vector.load %arg17[%c0_34, %c0_35] : memref<8x128xf32, #tpu.memory_space<vmem>>, vector<8x128xf32>
      %62 = arith.mulf %52, %61 : vector<8x128xf32>
      %63 = arith.mulf %46, %54 : vector<8x128xf32>
      %64 = arith.addf %62, %63 : vector<8x128xf32>
      %65 = math.tanh %64 : vector<8x128xf32>
      %66 = arith.mulf %60, %65 : vector<8x128xf32>
      %c0_36 = arith.constant 0 : index
      %c0_37 = arith.constant 0 : index
      %67 = vector.load %arg17[%c0_36, %c0_37] : memref<8x128xf32, #tpu.memory_space<vmem>>, vector<8x128xf32>
      tpu.vector_store %arg17[%c0_36, %c0_37], %64 {strides = array<i32>} : memref<8x128xf32, #tpu.memory_space<vmem>>, vector<8x128xf32>,
      %68 = arith.truncf %66 : vector<8x128xf32> to vector<8x128xbf16>
      %c0_38 = arith.constant 0 : index
      %c128 = arith.constant 128 : index
      %69 = vector.load %arg16[%c0_38, %c128] : memref<8x384xbf16, #tpu.memory_space<vmem>>, vector<8x128xbf16>
      tpu.vector_store %arg16[%c0_38, %c128], %68 {strides = array<i32>} : memref<8x384xbf16, #tpu.memory_space<vmem>>, vector<8x128xbf16>,
      %c0_39 = arith.constant 0 : index
      %c0_40 = arith.constant 0 : index
      %c0_41 = arith.constant 0 : index
      %70 = vector.load %arg2[%c0_39, %c0_40, %c0_41] : memref<8x128x128xbf16, #tpu.memory_space<vmem>>, vector<8x128x128xbf16>
      %71 = arith.truncf %66 : vector<8x128xf32> to vector<8x128xbf16>
      %c0_42 = arith.constant 0 : index
      %c0_43 = arith.constant 0 : index
      %72 = vector.load %arg7[%c0_42, %c0_43] : memref<128x128xbf16, #tpu.memory_space<vmem>>, vector<128x128xbf16>
      %cst_44 = arith.constant dense<0.000000e+00> : vector<8x128xf32>
      %73 = tpu.matmul %71, %72, %cst_44 {dimension_numbers = #tpu.dot_dimension_numbers<[1], [0], [0], [1], [0, 0, 1, 1], [], []>} : vector<8x128xbf16>, vector<128x128xbf16>, vector<8x128xf32> -> vector<8x128xf32>
      %74 = vector.shape_cast %73 : vector<8x128xf32> to vector<8x1x128xf32>
      %75 = arith.truncf %74 : vector<8x1x128xf32> to vector<8x1x128xbf16>
      "tpu.trace_start"() <{level = 10 : i32, message = "bqd,btd->bqt"}> : () -> ()
      %cst_45 = arith.constant dense<0.000000e+00> : vector<8x1x128xf32>
      %76 = tpu.matmul %75, %70, %cst_45 {dimension_numbers = #tpu.dot_dimension_numbers<[2], [2], [1], [1], [0, 0, 0, 1, 1, 1], [0], [0]>} : vector<8x1x128xbf16>, vector<8x128x128xbf16>, vector<8x1x128xf32> -> vector<8x1x128xf32>
      "tpu.trace_stop"() : () -> ()
      %77 = vector.shape_cast %76 : vector<8x1x128xf32> to vector<8x128xf32>
      %c0_46 = arith.constant 0 : index
      %c0_47 = arith.constant 0 : index
      %78 = vector.load %arg3[%c0_46, %c0_47] : memref<8x128xf32, #tpu.memory_space<vmem>>, vector<8x128xf32>
      %cst_48 = arith.constant 5.000000e-01 : f32
      %79 = vector.broadcast %cst_48 : f32 to vector<8x128xf32>
      %80 = arith.cmpf ogt, %78, %79 : vector<8x128xf32>
      %81 = vector.broadcast %cst : f32 to vector<8x128xf32>
      %82 = arith.select %80, %77, %81 : vector<8x128xi1>, vector<8x128xf32>
      %cst_49 = arith.constant dense<0xFF800000> : vector<8xf32>
      %83 = vector.multi_reduction <maximumf>, %82, %cst_49 [1] : vector<8x128xf32> to vector<8xf32>
      %84 = vector.shape_cast %83 : vector<8xf32> to vector<8x1xf32>
      %85 = vector.broadcast %84 : vector<8x1xf32> to vector<8x128xf32>
      %86 = arith.subf %82, %85 : vector<8x128xf32>
      %87 = math.exp %86 : vector<8x128xf32>
      %cst_50 = arith.constant dense<0.000000e+00> : vector<8xf32>
      %88 = vector.multi_reduction <add>, %87, %cst_50 [1] : vector<8x128xf32> to vector<8xf32>
      %89 = vector.shape_cast %88 : vector<8xf32> to vector<8x1xf32>
      %90 = tpu.reciprocal %89 {approx = true} : vector<8x1xf32> -> vector<8x1xf32>
      %91 = vector.broadcast %90 : vector<8x1xf32> to vector<8x128xf32>
      %92 = arith.mulf %87, %91 : vector<8x128xf32>
      %93 = vector.shape_cast %92 : vector<8x128xf32> to vector<8x1x128xf32>
      %94 = arith.truncf %93 : vector<8x1x128xf32> to vector<8x1x128xbf16>
      "tpu.trace_start"() <{level = 10 : i32, message = "bqt,btd->bqd"}> : () -> ()
      %cst_51 = arith.constant dense<0.000000e+00> : vector<8x1x128xf32>
      %95 = tpu.matmul %94, %70, %cst_51 {dimension_numbers = #tpu.dot_dimension_numbers<[2], [1], [1], [2], [0, 0, 0, 1, 1, 2], [0], [0]>} : vector<8x1x128xbf16>, vector<8x128x128xbf16>, vector<8x1x128xf32> -> vector<8x1x128xf32>
      "tpu.trace_stop"() : () -> ()
      %96 = vector.shape_cast %95 : vector<8x1x128xf32> to vector<8x128xf32>
      %97 = arith.truncf %96 : vector<8x128xf32> to vector<8x128xbf16>
      %c0_52 = arith.constant 0 : index
      %c0_53 = arith.constant 0 : index
      %98 = vector.load %arg8[%c0_52, %c0_53] : memref<128x128xbf16, #tpu.memory_space<vmem>>, vector<128x128xbf16>
      %cst_54 = arith.constant dense<0.000000e+00> : vector<8x128xf32>
      %99 = tpu.matmul %97, %98, %cst_54 {dimension_numbers = #tpu.dot_dimension_numbers<[1], [0], [0], [1], [0, 0, 1, 1], [], []>} : vector<8x128xbf16>, vector<128x128xbf16>, vector<8x128xf32> -> vector<8x128xf32>
      %100 = arith.truncf %99 : vector<8x128xf32> to vector<8x128xbf16>
      %c0_55 = arith.constant 0 : index
      %c256 = arith.constant 256 : index
      %101 = vector.load %arg16[%c0_55, %c256] : memref<8x384xbf16, #tpu.memory_space<vmem>>, vector<8x128xbf16>
      tpu.vector_store %arg16[%c0_55, %c256], %100 {strides = array<i32>} : memref<8x384xbf16, #tpu.memory_space<vmem>>, vector<8x128xbf16>,
      %c0_56 = arith.constant 0 : index
      %c128_57 = arith.constant 128 : index
      %102 = vector.load %arg16[%c0_56, %c128_57] : memref<8x384xbf16, #tpu.memory_space<vmem>>, vector<8x256xbf16>
      %c0_58 = arith.constant 0 : index
      %c0_59 = arith.constant 0 : index
      %103 = vector.load %arg9[%c0_58, %c0_59] : memref<256x128xbf16, #tpu.memory_space<vmem>>, vector<256x128xbf16>
      %cst_60 = arith.constant dense<0.000000e+00> : vector<8x128xf32>
      %104 = tpu.matmul %102, %103, %cst_60 {dimension_numbers = #tpu.dot_dimension_numbers<[1], [0], [0], [1], [0, 0, 1, 1], [], []>} : vector<8x256xbf16>, vector<256x128xbf16>, vector<8x128xf32> -> vector<8x128xf32>
      %c0_61 = arith.constant 0 : index
      %c0_62 = arith.constant 0 : index
      %105 = vector.load %arg10[%c0_61, %c0_62] : memref<1x128xf32, #tpu.memory_space<vmem>>, vector<1x128xf32>
      %106 = vector.broadcast %105 : vector<1x128xf32> to vector<8x128xf32>
      %107 = arith.addf %104, %106 : vector<8x128xf32>
      %108 = arith.index_cast %29 : i32 to index
      %c0_63 = arith.constant 0 : index
      %c0_64 = arith.constant 0 : index
      %109 = vector.load %arg12[%108, %c0_63, %c0_64] : memref<8x8x128xf32, #tpu.memory_space<vmem>>, vector<1x8x128xf32>
      %110 = vector.shape_cast %109 : vector<1x8x128xf32> to vector<8x128xf32>
      %111 = vector.shape_cast %107 : vector<8x128xf32> to vector<1x8x128xf32>
      tpu.vector_store %arg12[%108, %c0_63, %c0_64], %111 {strides = array<i32>} : memref<8x8x128xf32, #tpu.memory_space<vmem>>, vector<1x8x128xf32>,
      %112 = arith.index_cast %29 : i32 to index
      %c0_65 = arith.constant 0 : index
      %c0_66 = arith.constant 0 : index
      %113 = vector.load %arg13[%112, %c0_65, %c0_66] : memref<8x8x128xf32, #tpu.memory_space<vmem>>, vector<1x8x128xf32>
      %114 = vector.shape_cast %113 : vector<1x8x128xf32> to vector<8x128xf32>
      %115 = vector.shape_cast %92 : vector<8x128xf32> to vector<1x8x128xf32>
      tpu.vector_store %arg13[%112, %c0_65, %c0_66], %115 {strides = array<i32>} : memref<8x8x128xf32, #tpu.memory_space<vmem>>, vector<1x8x128xf32>,
      %cst_67 = arith.constant dense<0xFF800000> : vector<8xf32>
      %116 = vector.multi_reduction <maximumf>, %107, %cst_67 [1] : vector<8x128xf32> to vector<8xf32>
      %117 = vector.shape_cast %116 : vector<8xf32> to vector<8x1xf32>
      %118 = tpu.iota {dimensions = array<i32: 1>} : vector<8x128xi32>
      %119 = vector.broadcast %117 : vector<8x1xf32> to vector<8x128xf32>
      %120 = arith.cmpf oeq, %107, %119 : vector<8x128xf32>
      %c128_i32_68 = arith.constant 128 : i32
      %121 = vector.broadcast %c128_i32_68 : i32 to vector<8x128xi32>
      %122 = arith.select %120, %118, %121 : vector<8x128xi1>, vector<8x128xi32>
      %cst_69 = arith.constant dense<2147483647> : vector<8xi32>
      %123 = vector.multi_reduction <minsi>, %122, %cst_69 [1] : vector<8x128xi32> to vector<8xi32>
      %124 = vector.shape_cast %123 : vector<8xi32> to vector<8x1xi32>
      %125 = vector.broadcast %124 : vector<8x1xi32> to vector<8x128xi32>
      %126 = arith.cmpi eq, %118, %125 : vector<8x128xi32>
      %127 = arith.extui %126 : vector<8x128xi1> to vector<8x128xi32>
      %128 = arith.sitofp %127 : vector<8x128xi32> to vector<8x128xf32>
      %129 = arith.truncf %128 : vector<8x128xf32> to vector<8x128xbf16>
      %c0_70 = arith.constant 0 : index
      %c0_71 = arith.constant 0 : index
      %130 = vector.load %arg18[%c0_70, %c0_71] : memref<8x128xbf16, #tpu.memory_space<vmem>>, vector<8x128xbf16>
      tpu.vector_store %arg18[%c0_70, %c0_71], %129 {strides = array<i32>} : memref<8x128xbf16, #tpu.memory_space<vmem>>, vector<8x128xbf16>,
    }
    %c8_i32_2 = arith.constant 8 : i32
    %c0 = arith.constant 0 : index
    %c0_3 = arith.constant 0 : index
    %c0_4 = arith.constant 0 : index
    %4 = vector.load %arg12[%c0, %c0_3, %c0_4] : memref<8x8x128xf32, #tpu.memory_space<vmem>>, vector<8x8x128xf32>
    %cst_5 = arith.constant dense<0xFF800000> : vector<8x8xf32>
    %5 = vector.multi_reduction <maximumf>, %4, %cst_5 [2] : vector<8x8x128xf32> to vector<8x8xf32>
    %6 = vector.shape_cast %5 : vector<8x8xf32> to vector<8x8x1xf32>
    %7 = tpu.iota {dimensions = array<i32: 2>} : vector<8x8x128xi32>
    %8 = vector.broadcast %6 : vector<8x8x1xf32> to vector<8x8x128xf32>
    %9 = arith.cmpf oeq, %4, %8 : vector<8x8x128xf32>
    %c128_i32 = arith.constant 128 : i32
    %10 = vector.broadcast %c128_i32 : i32 to vector<8x8x128xi32>
    %11 = arith.select %9, %7, %10 : vector<8x8x128xi1>, vector<8x8x128xi32>
    %cst_6 = arith.constant dense<2147483647> : vector<8x8xi32>
    %12 = vector.multi_reduction <minsi>, %11, %cst_6 [2] : vector<8x8x128xi32> to vector<8x8xi32>
    %13 = vector.broadcast %6 : vector<8x8x1xf32> to vector<8x8x128xf32>
    %14 = arith.subf %4, %13 : vector<8x8x128xf32>
    %15 = math.exp %14 : vector<8x8x128xf32>
    %cst_7 = arith.constant dense<0.000000e+00> : vector<8x8xf32>
    %16 = vector.multi_reduction <add>, %15, %cst_7 [2] : vector<8x8x128xf32> to vector<8x8xf32>
    %17 = math.log %16 : vector<8x8xf32>
    %cst_8 = arith.constant 0.000000e+00 : f32
    %18 = vector.broadcast %cst_8 : f32 to vector<8x8xf32>
    %19 = arith.subf %18, %17 : vector<8x8xf32>
    %20 = tpu.transpose %12, [1, 0] : vector<8x8xi32> -> vector<8x8xi32>
    %c0_9 = arith.constant 0 : index
    %c0_10 = arith.constant 0 : index
    %c0_11 = arith.constant 0 : index
    %21 = vector.load %arg14[%c0_9, %c0_10, %c0_11] : memref<1x8x8xi32, #tpu.memory_space<vmem>>, vector<1x8x8xi32>
    %22 = vector.shape_cast %21 : vector<1x8x8xi32> to vector<8x8xi32>
    %23 = vector.shape_cast %20 : vector<8x8xi32> to vector<1x8x8xi32>
    tpu.vector_store %arg14[%c0_9, %c0_10, %c0_11], %23 {strides = array<i32>} : memref<1x8x8xi32, #tpu.memory_space<vmem>>, vector<1x8x8xi32>,
    %24 = tpu.transpose %19, [1, 0] : vector<8x8xf32> -> vector<8x8xf32>
    %c0_12 = arith.constant 0 : index
    %c0_13 = arith.constant 0 : index
    %c0_14 = arith.constant 0 : index
    %25 = vector.load %arg15[%c0_12, %c0_13, %c0_14] : memref<1x8x8xf32, #tpu.memory_space<vmem>>, vector<1x8x8xf32>
    %26 = vector.shape_cast %25 : vector<1x8x8xf32> to vector<8x8xf32>
    %27 = vector.shape_cast %24 : vector<8x8xf32> to vector<1x8x8xf32>
    tpu.vector_store %arg15[%c0_12, %c0_13, %c0_14], %27 {strides = array<i32>} : memref<1x8x8xf32, #tpu.memory_space<vmem>>, vector<1x8x8xf32>,
    return
  }
  func.func @transform_0(%arg0: i32, %arg1: i32) -> (i32, i32, i32) {
    %c0_i32 = arith.constant 0 : i32
    %c0_i32_0 = arith.constant 0 : i32
    %c0_i32_1 = arith.constant 0 : i32
    return %arg0, %c0_i32, %c0_i32_0 : i32, i32, i32
  }
  func.func @transform_1(%arg0: i32, %arg1: i32) -> (i32, i32) {
    %c0_i32 = arith.constant 0 : i32
    %c0_i32_0 = arith.constant 0 : i32
    return %arg0, %c0_i32 : i32, i32
  }
  func.func @transform_2(%arg0: i32, %arg1: i32) -> (i32, i32) {
    %c0_i32 = arith.constant 0 : i32
    %c0_i32_0 = arith.constant 0 : i32
    %c0_i32_1 = arith.constant 0 : i32
    return %c0_i32, %c0_i32_0 : i32, i32
  }
  func.func @transform_3(%arg0: i32, %arg1: i32) -> (i32, i32) {
    %c0_i32 = arith.constant 0 : i32
    %c0_i32_0 = arith.constant 0 : i32
    %c0_i32_1 = arith.constant 0 : i32
    return %c0_i32, %c0_i32_0 : i32, i32
  }
  func.func @transform_4(%arg0: i32, %arg1: i32) -> (i32, i32) {
    %c0_i32 = arith.constant 0 : i32
    %c0_i32_0 = arith.constant 0 : i32
    %c0_i32_1 = arith.constant 0 : i32
    return %c0_i32, %c0_i32_0 : i32, i32
  }
  func.func @transform_5(%arg0: i32, %arg1: i32) -> (i32, i32) {
    %c0_i32 = arith.constant 0 : i32
    %c0_i32_0 = arith.constant 0 : i32
    %c0_i32_1 = arith.constant 0 : i32
    return %c0_i32, %c0_i32_0 : i32, i32
  }
  func.func @transform_6(%arg0: i32, %arg1: i32) -> (i32, i32) {
    %c0_i32 = arith.constant 0 : i32
    %c0_i32_0 = arith.constant 0 : i32
    %c0_i32_1 = arith.constant 0 : i32
    return %c0_i32, %c0_i32_0 : i32, i32
  }
  func.func @transform_7(%arg0: i32, %arg1: i32) -> (i32, i32) {
    %c0_i32 = arith.constant 0 : i32
    %c0_i32_0 = arith.constant 0 : i32
    %c0_i32_1 = arith.constant 0 : i32
    return %c0_i32, %c0_i32_0 : i32, i32
  }
  func.func @transform_8(%arg0: i32, %arg1: i32) -> (i32, i32) {
    %c0_i32 = arith.constant 0 : i32
    %c0_i32_0 = arith.constant 0 : i32
    %c0_i32_1 = arith.constant 0 : i32
    return %c0_i32, %c0_i32_0 : i32, i32
  }
  func.func @transform_9(%arg0: i32, %arg1: i32) -> (i32, i32) {
    %c0_i32 = arith.constant 0 : i32
    %c0_i32_0 = arith.constant 0 : i32
    return %arg0, %c0_i32 : i32, i32
  }
  func.func @transform_10(%arg0: i32, %arg1: i32) -> (i32, i32, i32) {
    %c0_i32 = arith.constant 0 : i32
    %c0_i32_0 = arith.constant 0 : i32
    return %arg1, %arg0, %c0_i32 : i32, i32, i32
  }
  func.func @transform_11(%arg0: i32, %arg1: i32) -> (i32, i32, i32) {
    %c0_i32 = arith.constant 0 : i32
    %c0_i32_0 = arith.constant 0 : i32
    return %arg1, %arg0, %c0_i32 : i32, i32, i32
  }
  func.func @transform_12(%arg0: i32, %arg1: i32) -> (i32, i32, i32) {
    %c0_i32 = arith.constant 0 : i32
    %c0_i32_0 = arith.constant 0 : i32
    return %arg1, %arg0, %c0_i32 : i32, i32, i32
  }
  func.func @transform_13(%arg0: i32, %arg1: i32) -> (i32, i32, i32) {
    %c0_i32 = arith.constant 0 : i32
    %c0_i32_0 = arith.constant 0 : i32
    return %arg1, %arg0, %c0_i32 : i32, i32, i32
  }
}

</mosaic_0001>

<llo_original>
// kernel: tpu_custom_call.1
$region0: #{tpu_custom_call.1}
  #allocation0 [shape = 'u32[]', space=smem, size = 0x4, offset = 0x4, fixed_abs, tag = 'smem constant byte address 0x4 - core index']
  #allocation1 [shape = 'u32[72,128]{1,0:T(1,128)}', space=vmem, size = 0x9000, scoped, tag = 'internal scratch']
  #allocation2 [shape = 'bf16[8,384]{1,0:T(8,128)(2,1)}', space=vmem, size = 0x1800, scoped, tag = 'scratch operand']
  #allocation3 [shape = 'f32[8,128]{1,0:T(8,128)}', space=vmem, size = 0x1000, scoped, tag = 'scratch operand']
  #allocation4 [shape = 'bf16[8,128]{1,0:T(8,128)(2,1)}', space=vmem, size = 0x800, scoped, tag = 'scratch operand']
  %s0 = inlined_call_operand.hbm [shape: bf16[8,128,128], index: 0, kind: input, shape index: {}]
  %s1 = inlined_call_operand.hbm [shape: f32[8,128], index: 1, kind: input, shape index: {}]
  %s2 = inlined_call_operand.hbm [shape: bf16[128,128], index: 2, kind: input, shape index: {}]
  %s3 = inlined_call_operand.hbm [shape: bf16[384,512], index: 3, kind: input, shape index: {}]
  %s4 = inlined_call_operand.hbm [shape: f32[1,512], index: 4, kind: input, shape index: {}]
  %s5 = inlined_call_operand.hbm [shape: bf16[128,128], index: 5, kind: input, shape index: {}]
  %s6 = inlined_call_operand.hbm [shape: bf16[128,128], index: 6, kind: input, shape index: {}]
  %s7 = inlined_call_operand.hbm [shape: bf16[256,128], index: 7, kind: input, shape index: {}]
  %s8 = inlined_call_operand.vmem [shape: f32[1,128], index: 8, kind: input, shape index: {}]
  %s9 = inlined_call_operand.vmem [shape: bf16[8,128], index: 9, kind: input, shape index: {}]
  %s10 = inlined_call_operand.hbm [shape: f32[8,8,128], index: 10, kind: output, shape index: {0}]
  %s11 = inlined_call_operand.hbm [shape: f32[8,8,128], index: 11, kind: output, shape index: {1}]
  %s12 = inlined_call_operand.hbm [shape: s32[1,8,8], index: 12, kind: output, shape index: {2}]
  %s13 = inlined_call_operand.hbm [shape: f32[1,8,8], index: 13, kind: output, shape index: {3}]
  %14 = xla_tuple %s10, %s11, %s12, %s13
  %s15 = sld [smem:[#allocation0]]
  $region117: #{tpu_custom_call.1} parent=0
    _
  %s17 = ssub.s32 1, %s15
  %s18 = scalar_select 0, %s17, %s15
  $region1: #{tpu_custom_call.1} parent=0
    #allocation5 [shape = 'u8[262144]{0}', space=vmem, size = 0x40000, scoped, tag = 'input window, operand 0, single buffered']
    #allocation6 [shape = 's32[1]{0}', space=sflag, size = 0x4, scoped, tag = 'scoped memory for tpu_custom_call.1']
    #allocation7 [shape = 's32[1]{0}', space=sflag, size = 0x4, scoped, tag = 'scoped memory for tpu_custom_call.1']
    #allocation8 [shape = 'u8[4096]{0}', space=vmem, size = 0x1000, scoped, tag = 'input window, operand 1, single buffered']
    #allocation9 [shape = 's32[1]{0}', space=sflag, size = 0x4, scoped, tag = 'scoped memory for tpu_custom_call.1']
    #allocation10 [shape = 'u8[32768]{0}', space=vmem, size = 0x8000, scoped, tag = 'input window, operand 2, single buffered']
    #allocation11 [shape = 'u8[393216]{0}', space=vmem, size = 0x60000, scoped, tag = 'input window, operand 3, single buffered']
    #allocation12 [shape = 's32[1]{0}', space=sflag, size = 0x4, scoped, tag = 'scoped memory for tpu_custom_call.1']
    #allocation13 [shape = 'u8[2048]{0}', space=vmem, size = 0x800, scoped, tag = 'input window, operand 4, single buffered']
    #allocation14 [shape = 'u8[32768]{0}', space=vmem, size = 0x8000, scoped, tag = 'input window, operand 5, single buffered']
    #allocation15 [shape = 's32[1]{0}', space=sflag, size = 0x4, scoped, tag = 'scoped memory for tpu_custom_call.1']
    #allocation16 [shape = 'u8[32768]{0}', space=vmem, size = 0x8000, scoped, tag = 'input window, operand 6, single buffered']
    #allocation17 [shape = 'u8[65536]{0}', space=vmem, size = 0x10000, scoped, tag = 'input window, operand 7, single buffered']
    #allocation18 [shape = 's32[1]{0}', space=sflag, size = 0x4, scoped, tag = 'scoped memory for tpu_custom_call.1']
    #allocation19 [shape = 'u8[32768]{0}', space=vmem, size = 0x8000, scoped, tag = 'output window, operand 0, single buffered']
    #allocation20 [shape = 'u8[32768]{0}', space=vmem, size = 0x8000, scoped, tag = 'output window, operand 1, single buffered']
    #allocation21 [shape = 's32[1]{0}', space=sflag, size = 0x4, scoped, tag = 'scoped memory for tpu_custom_call.1']
    #allocation22 [shape = 'u8[4096]{0}', space=vmem, size = 0x1000, scoped, tag = 'output window, operand 2, single buffered']
    #allocation23 [shape = 'u8[4096]{0}', space=vmem, size = 0x1000, scoped, tag = 'output window, operand 3, single buffered']
    #allocation24 [shape = 's32[1]{0}', space=sflag, size = 0x4, scoped, tag = 'scoped memory for tpu_custom_call.1']
    %19 = vsyncpa [#allocation6], 0
    %20 = vsyncpa [#allocation9], 0
    %21 = vsyncpa [#allocation12], 0
    %22 = vsyncpa [#allocation15], 0
    %23 = vsyncpa [#allocation18], 0
    %24 = vsyncpa [#allocation7], 0
    %25 = vsyncpa [#allocation21], 0
    %26 = vsyncpa [#allocation24], 0
    // Predicated region
    $region2: #{tpu_custom_call.1} parent=1 // pred_check
      _
    $region3: #{tpu_custom_call.1} parent=1 // pred_check_branch
      %28 = sbr.rel (0) target = $region5
    $region4: #{tpu_custom_call.1} parent=1 // pred_region
      %30 = vsyncadd [#allocation6], 0
      %s31 = sshll.u32 %s0, 4
      %s32 = int_to_ptr.hbm [resolvable:$true] %s31
      %s33 = sshll.u32 [#allocation5], 4
      %s34 = int_to_ptr.vmem [resolvable:$true] %s33
      %39 = dma.hbm_to_vmem [thread:$0]  %s32, 8192, %s34, [#allocation6], 64, 64, 4
    $region5: #{tpu_custom_call.1} parent=1 // pred_fallthru
      _
    // Predicated region
    $region6: #{tpu_custom_call.1} parent=1 // pred_check
      _
    $region7: #{tpu_custom_call.1} parent=1 // pred_check_branch
      %41 = sbr.rel (0) target = $region9
    $region8: #{tpu_custom_call.1} parent=1 // pred_region
      %43 = vsyncadd [#allocation9], 0
      %s45 = sshll.u32 %s1, 4
      %s46 = int_to_ptr.hbm [resolvable:$true] %s45
      %s47 = sshll.u32 [#allocation8], 4
      %s48 = int_to_ptr.vmem [resolvable:$true] %s47
      %50 = dma.hbm_to_vmem [thread:$0]  %s46, 128, %s48, [#allocation9]
    $region9: #{tpu_custom_call.1} parent=1 // pred_fallthru
      _
    // Predicated region
    $region10: #{tpu_custom_call.1} parent=1 // pred_check
      _
    $region11: #{tpu_custom_call.1} parent=1 // pred_check_branch
      %52 = sbr.rel (0) target = $region13
    $region12: #{tpu_custom_call.1} parent=1 // pred_region
      %54 = vsyncadd [#allocation9], 0
      %s55 = sshll.u32 %s2, 4
      %s56 = int_to_ptr.hbm [resolvable:$true] %s55
      %s57 = sshll.u32 [#allocation10], 4
      %s58 = int_to_ptr.vmem [resolvable:$true] %s57
      %63 = dma.hbm_to_vmem [thread:$0]  %s56, 1024, %s58, [#allocation9], 64, 64, 4
    $region13: #{tpu_custom_call.1} parent=1 // pred_fallthru
      _
    // Predicated region
    $region14: #{tpu_custom_call.1} parent=1 // pred_check
      _
    $region15: #{tpu_custom_call.1} parent=1 // pred_check_branch
      %65 = sbr.rel (0) target = $region17
    $region16: #{tpu_custom_call.1} parent=1 // pred_region
      %67 = vsyncadd [#allocation12], 0
      %s68 = sshll.u32 %s3, 4
      %s69 = int_to_ptr.hbm [resolvable:$true] %s68
      %s70 = sshll.u32 [#allocation11], 4
      %s71 = int_to_ptr.vmem [resolvable:$true] %s70
      %76 = dma.hbm_to_vmem [thread:$0]  %s69, 12288, %s71, [#allocation12], 256, 256, 16
    $region17: #{tpu_custom_call.1} parent=1 // pred_fallthru
      _
    // Predicated region
    $region18: #{tpu_custom_call.1} parent=1 // pred_check
      _
    $region19: #{tpu_custom_call.1} parent=1 // pred_check_branch
      %78 = sbr.rel (0) target = $region21
    $region20: #{tpu_custom_call.1} parent=1 // pred_region
      %80 = vsyncadd [#allocation12], 0
      %s82 = sshll.u32 %s4, 4
      %s83 = int_to_ptr.hbm [resolvable:$true] %s82
      %s84 = sshll.u32 [#allocation13], 4
      %s85 = int_to_ptr.vmem [resolvable:$true] %s84
      %87 = dma.hbm_to_vmem [thread:$0]  %s83, 64, %s85, [#allocation12]
    $region21: #{tpu_custom_call.1} parent=1 // pred_fallthru
      _
    // Predicated region
    $region22: #{tpu_custom_call.1} parent=1 // pred_check
      _
    $region23: #{tpu_custom_call.1} parent=1 // pred_check_branch
      %89 = sbr.rel (0) target = $region25
    $region24: #{tpu_custom_call.1} parent=1 // pred_region
      %91 = vsyncadd [#allocation15], 0
      %s92 = sshll.u32 %s5, 4
      %s93 = int_to_ptr.hbm [resolvable:$true] %s92
      %s94 = sshll.u32 [#allocation14], 4
      %s95 = int_to_ptr.vmem [resolvable:$true] %s94
      %100 = dma.hbm_to_vmem [thread:$0]  %s93, 1024, %s95, [#allocation15], 64, 64, 4
    $region25: #{tpu_custom_call.1} parent=1 // pred_fallthru
      _
    // Predicated region
    $region26: #{tpu_custom_call.1} parent=1 // pred_check
      _
    $region27: #{tpu_custom_call.1} parent=1 // pred_check_branch
      %102 = sbr.rel (0) target = $region29
    $region28: #{tpu_custom_call.1} parent=1 // pred_region
      %104 = vsyncadd [#allocation15], 0
      %s105 = sshll.u32 %s6, 4
      %s106 = int_to_ptr.hbm [resolvable:$true] %s105
      %s107 = sshll.u32 [#allocation16], 4
      %s108 = int_to_ptr.vmem [resolvable:$true] %s107
      %113 = dma.hbm_to_vmem [thread:$0]  %s106, 1024, %s108, [#allocation15], 64, 64, 4
    $region29: #{tpu_custom_call.1} parent=1 // pred_fallthru
      _
    // Predicated region
    $region30: #{tpu_custom_call.1} parent=1 // pred_check
      _
    $region31: #{tpu_custom_call.1} parent=1 // pred_check_branch
      %115 = sbr.rel (0) target = $region33
    $region32: #{tpu_custom_call.1} parent=1 // pred_region
      %117 = vsyncadd [#allocation18], 0
      %s118 = sshll.u32 %s7, 4
      %s119 = int_to_ptr.hbm [resolvable:$true] %s118
      %s120 = sshll.u32 [#allocation17], 4
      %s121 = int_to_ptr.vmem [resolvable:$true] %s120
      %126 = dma.hbm_to_vmem [thread:$0]  %s119, 2048, %s121, [#allocation18], 64, 64, 4
    $region33: #{tpu_custom_call.1} parent=1 // pred_fallthru
      _
    // Predicated region
    $region34: #{tpu_custom_call.1} parent=1 // pred_check
      _
    $region35: #{tpu_custom_call.1} parent=1 // pred_check_branch
      %128 = sbr.rel (0) target = $region37
    $region36: #{tpu_custom_call.1} parent=1 // pred_region
      _
    $region37: #{tpu_custom_call.1} parent=1 // pred_fallthru
      _
    // Predicated region
    $region38: #{tpu_custom_call.1} parent=1 // pred_check
      _
    $region39: #{tpu_custom_call.1} parent=1 // pred_check_branch
      %130 = sbr.rel (0) target = $region41
    $region40: #{tpu_custom_call.1} parent=1 // pred_region
      _
    $region41: #{tpu_custom_call.1} parent=1 // pred_fallthru
      _
    // Predicated region
    $region42: #{tpu_custom_call.1} parent=1 // pred_check
      _
    $region43: #{tpu_custom_call.1} parent=1 // pred_check_branch
      %132 = sbr.rel (0) target = $region45
    $region44: #{tpu_custom_call.1} parent=1 // pred_region
      %134 = dma.done [#allocation6], 8192
    $region45: #{tpu_custom_call.1} parent=1 // pred_fallthru
      _
    // Predicated region
    $region46: #{tpu_custom_call.1} parent=1 // pred_check
      _
    $region47: #{tpu_custom_call.1} parent=1 // pred_check_branch
      %136 = sbr.rel (0) target = $region49
    $region48: #{tpu_custom_call.1} parent=1 // pred_region
      %138 = dma.done [#allocation9], 128
    $region49: #{tpu_custom_call.1} parent=1 // pred_fallthru
      _
    // Predicated region
    $region50: #{tpu_custom_call.1} parent=1 // pred_check
      _
    $region51: #{tpu_custom_call.1} parent=1 // pred_check_branch
      %140 = sbr.rel (0) target = $region53
    $region52: #{tpu_custom_call.1} parent=1 // pred_region
      %142 = dma.done [#allocation9], 1024
    $region53: #{tpu_custom_call.1} parent=1 // pred_fallthru
      _
    // Predicated region
    $region54: #{tpu_custom_call.1} parent=1 // pred_check
      _
    $region55: #{tpu_custom_call.1} parent=1 // pred_check_branch
      %144 = sbr.rel (0) target = $region57
    $region56: #{tpu_custom_call.1} parent=1 // pred_region
      %146 = dma.done [#allocation12], 12288
    $region57: #{tpu_custom_call.1} parent=1 // pred_fallthru
      _
    // Predicated region
    $region58: #{tpu_custom_call.1} parent=1 // pred_check
      _
    $region59: #{tpu_custom_call.1} parent=1 // pred_check_branch
      %148 = sbr.rel (0) target = $region61
    $region60: #{tpu_custom_call.1} parent=1 // pred_region
      %150 = dma.done [#allocation12], 64
    $region61: #{tpu_custom_call.1} parent=1 // pred_fallthru
      _
    // Predicated region
    $region62: #{tpu_custom_call.1} parent=1 // pred_check
      _
    $region63: #{tpu_custom_call.1} parent=1 // pred_check_branch
      %152 = sbr.rel (0) target = $region65
    $region64: #{tpu_custom_call.1} parent=1 // pred_region
      %154 = dma.done [#allocation15], 1024
    $region65: #{tpu_custom_call.1} parent=1 // pred_fallthru
      _
    // Predicated region
    $region66: #{tpu_custom_call.1} parent=1 // pred_check
      _
    $region67: #{tpu_custom_call.1} parent=1 // pred_check_branch
      %156 = sbr.rel (0) target = $region69
    $region68: #{tpu_custom_call.1} parent=1 // pred_region
      %158 = dma.done [#allocation15], 1024
    $region69: #{tpu_custom_call.1} parent=1 // pred_fallthru
      _
    // Predicated region
    $region70: #{tpu_custom_call.1} parent=1 // pred_check
      _
    $region71: #{tpu_custom_call.1} parent=1 // pred_check_branch
      %160 = sbr.rel (0) target = $region73
    $region72: #{tpu_custom_call.1} parent=1 // pred_region
      %162 = dma.done [#allocation18], 2048
    $region73: #{tpu_custom_call.1} parent=1 // pred_fallthru
      _
    %p164 = scmp.eq.s32.totalorder 0, 0
    // Predicated region
    $region74: #{tpu_custom_call.1} parent=1 // pred_check
      %p165 = pneg %p164
    $region75: #{tpu_custom_call.1} parent=1 // pred_check_branch
      %167 = sbr.rel (%p165) target = $region77
    $region76: #{tpu_custom_call.1} parent=1 // pred_region
      %168 = vst [vmem:[#allocation2] sm:$0xff] 0
      %169 = vst [vmem:[#allocation2 + $0x8] sm:$0xf] 0
      %170 = vst [vmem:[#allocation3] sm:$0xff] 0.0
      %v171 = vld [vmem:[%s9] sm:$0xf]
      %172 = vst [vmem:[#allocation4] sm:$0xf] %v171
    $region77: #{tpu_custom_call.1} parent=1 // pred_fallthru
      _
    loop: start=0, step=1, limit=8
    $region78: #{tpu_custom_call.1} parent=1 // loop_pre_header
      _
    $region79: #{tpu_custom_call.1} parent=1 // loop_header
      %s174 = sphi 0, %s178
      %p175 = scmp.ge.s32.totalorder %s174, 8
    $region80: #{tpu_custom_call.1} parent=1 // loop_header_branch
      %177 = sbr.rel (%p175) target = $region84
    $region81: #{tpu_custom_call.1} parent=1 // loop_body
      %v179 = vld [vmem:[#allocation4] sm:$0xf]
      %v180 = vld [vmem:[#allocation10] sm:$0xf]
      %v181 = vld [vmem:[#allocation10 + $0x4] sm:$0xf]
      %v182 = vld [vmem:[#allocation10 + $0x8] sm:$0xf]
      %v183 = vld [vmem:[#allocation10 + $0xc] sm:$0xf]
      %v184 = vld [vmem:[#allocation10 + $0x10] sm:$0xf]
      %v185 = vld [vmem:[#allocation10 + $0x14] sm:$0xf]
      %v186 = vld [vmem:[#allocation10 + $0x18] sm:$0xf]
      %v187 = vld [vmem:[#allocation10 + $0x1c] sm:$0xf]
      %v188 = vld [vmem:[#allocation10 + $0x20] sm:$0xf]
      %v189 = vld [vmem:[#allocation10 + $0x24] sm:$0xf]
      %v190 = vld [vmem:[#allocation10 + $0x28] sm:$0xf]
      %v191 = vld [vmem:[#allocation10 + $0x2c] sm:$0xf]
      %v192 = vld [vmem:[#allocation10 + $0x30] sm:$0xf]
      %v193 = vld [vmem:[#allocation10 + $0x34] sm:$0xf]
      %v194 = vld [vmem:[#allocation10 + $0x38] sm:$0xf]
      %v195 = vld [vmem:[#allocation10 + $0x3c] sm:$0xf]
      %v212 = vunpack.c.l.b16 %v180
      %v213 = vunpack.c.l.b16 %v181
      %v214 = vunpack.c.l.b16 %v182
      %v215 = vunpack.c.l.b16 %v183
      %v216 = vunpack.c.l.b16 %v184
      %v217 = vunpack.c.l.b16 %v185
      %v218 = vunpack.c.l.b16 %v186
      %v219 = vunpack.c.l.b16 %v187
      %v220 = vunpack.c.l.b16 %v188
      %v221 = vunpack.c.l.b16 %v189
      %v222 = vunpack.c.l.b16 %v190
      %v223 = vunpack.c.l.b16 %v191
      %v224 = vunpack.c.l.b16 %v192
      %v225 = vunpack.c.l.b16 %v193
      %v226 = vunpack.c.l.b16 %v194
      %v227 = vunpack.c.l.b16 %v195
      %v228 = vpack.c.b16 %v213, %v212
      %v229 = vpack.c.b16 %v215, %v214
      %v230 = vpack.c.b16 %v217, %v216
      %v231 = vpack.c.b16 %v219, %v218
      %v232 = vpack.c.b16 %v221, %v220
      %v233 = vpack.c.b16 %v223, %v222
      %v234 = vpack.c.b16 %v225, %v224
      %v235 = vpack.c.b16 %v227, %v226
      %244 = vmatpush.bf16.msra.mxu0 %v235
      %245 = vmatpush.bf16.msra.mxu0 %v234
      %246 = vmatpush.bf16.msra.mxu0 %v233
      %247 = vmatpush.bf16.msra.mxu0 %v232
      %248 = vmatpush.bf16.msra.mxu0 %v231
      %249 = vmatpush.bf16.msra.mxu0 %v230
      %250 = vmatpush.bf16.msra.mxu0 %v229
      %251 = vmatpush.bf16.msra.mxu0 %v228
      %252 = vmatmul.bf16.gmra.mxu0 %v179
      %v253 = vpop.f32.mrf.mxu0
      %v254 = vadd.f32 0.0, %v253
      %v255 = vpop.f32.mrf.mxu0
      %256 = vdwg.mxu0
      %v257 = vpack.c.bf16 %v254, %v254
      %258 = vst [vmem:[#allocation2] sm:$0xf] %v257
      %v259 = vld [vmem:[#allocation2] sm:$0xff]
      %v260 = vld [vmem:[#allocation2 + $0x8] sm:$0xf]
      %v261 = vld [vmem:[#allocation11] sm:$0xff]
      %v262 = vld [vmem:[#allocation11 + $0x8] sm:$0xff]
      %v263 = vld [vmem:[#allocation11 + $0x10] sm:$0xff]
      %v264 = vld [vmem:[#allocation11 + $0x18] sm:$0xff]
      %v265 = vld [vmem:[#allocation11 + $0x20] sm:$0xff]
      %v266 = vld [vmem:[#allocation11 + $0x28] sm:$0xff]
      %v267 = vld [vmem:[#allocation11 + $0x30] sm:$0xff]
      %v268 = vld [vmem:[#allocation11 + $0x38] sm:$0xff]
      %v269 = vld [vmem:[#allocation11 + $0x40] sm:$0xff]
      %v270 = vld [vmem:[#allocation11 + $0x48] sm:$0xff]
      %v271 = vld [vmem:[#allocation11 + $0x50] sm:$0xff]
      %v272 = vld [vmem:[#allocation11 + $0x58] sm:$0xff]
      %v273 = vld [vmem:[#allocation11 + $0x60] sm:$0xff]
      %v274 = vld [vmem:[#allocation11 + $0x68] sm:$0xff]
      %v275 = vld [vmem:[#allocation11 + $0x70] sm:$0xff]
      %v276 = vld [vmem:[#allocation11 + $0x78] sm:$0xff]
      %v277 = vld [vmem:[#allocation11 + $0x80] sm:$0xff]
      %v278 = vld [vmem:[#allocation11 + $0x88] sm:$0xff]
      %v279 = vld [vmem:[#allocation11 + $0x90] sm:$0xff]
      %v280 = vld [vmem:[#allocation11 + $0x98] sm:$0xff]
      %v281 = vld [vmem:[#allocation11 + $0xa0] sm:$0xff]
      %v282 = vld [vmem:[#allocation11 + $0xa8] sm:$0xff]
      %v283 = vld [vmem:[#allocation11 + $0xb0] sm:$0xff]
      %v284 = vld [vmem:[#allocation11 + $0xb8] sm:$0xff]
      %v285 = vld [vmem:[#allocation11 + $0xc0] sm:$0xff]
      %v286 = vld [vmem:[#allocation11 + $0xc8] sm:$0xff]
      %v287 = vld [vmem:[#allocation11 + $0xd0] sm:$0xff]
      %v288 = vld [vmem:[#allocation11 + $0xd8] sm:$0xff]
      %v289 = vld [vmem:[#allocation11 + $0xe0] sm:$0xff]
      %v290 = vld [vmem:[#allocation11 + $0xe8] sm:$0xff]
      %v291 = vld [vmem:[#allocation11 + $0xf0] sm:$0xff]
      %v292 = vld [vmem:[#allocation11 + $0xf8] sm:$0xff]
      %v293 = vld [vmem:[#allocation11 + $0x100] sm:$0xff]
      %v294 = vld [vmem:[#allocation11 + $0x108] sm:$0xff]
      %v295 = vld [vmem:[#allocation11 + $0x110] sm:$0xff]
      %v296 = vld [vmem:[#allocation11 + $0x118] sm:$0xff]
      %v297 = vld [vmem:[#allocation11 + $0x120] sm:$0xff]
      %v298 = vld [vmem:[#allocation11 + $0x128] sm:$0xff]
      %v299 = vld [vmem:[#allocation11 + $0x130] sm:$0xff]
      %v300 = vld [vmem:[#allocation11 + $0x138] sm:$0xff]
      %v301 = vld [vmem:[#allocation11 + $0x140] sm:$0xff]
      %v302 = vld [vmem:[#allocation11 + $0x148] sm:$0xff]
      %v303 = vld [vmem:[#allocation11 + $0x150] sm:$0xff]
      %v304 = vld [vmem:[#allocation11 + $0x158] sm:$0xff]
      %v305 = vld [vmem:[#allocation11 + $0x160] sm:$0xff]
      %v306 = vld [vmem:[#allocation11 + $0x168] sm:$0xff]
      %v307 = vld [vmem:[#allocation11 + $0x170] sm:$0xff]
      %v308 = vld [vmem:[#allocation11 + $0x178] sm:$0xff]
      %v309 = vld [vmem:[#allocation11 + $0x180] sm:$0xff]
      %v310 = vld [vmem:[#allocation11 + $0x188] sm:$0xff]
      %v311 = vld [vmem:[#allocation11 + $0x190] sm:$0xff]
      %v312 = vld [vmem:[#allocation11 + $0x198] sm:$0xff]
      %v313 = vld [vmem:[#allocation11 + $0x1a0] sm:$0xff]
      %v314 = vld [vmem:[#allocation11 + $0x1a8] sm:$0xff]
      %v315 = vld [vmem:[#allocation11 + $0x1b0] sm:$0xff]
      %v316 = vld [vmem:[#allocation11 + $0x1b8] sm:$0xff]
      %v317 = vld [vmem:[#allocation11 + $0x1c0] sm:$0xff]
      %v318 = vld [vmem:[#allocation11 + $0x1c8] sm:$0xff]
      %v319 = vld [vmem:[#allocation11 + $0x1d0] sm:$0xff]
      %v320 = vld [vmem:[#allocation11 + $0x1d8] sm:$0xff]
      %v321 = vld [vmem:[#allocation11 + $0x1e0] sm:$0xff]
      %v322 = vld [vmem:[#allocation11 + $0x1e8] sm:$0xff]
      %v323 = vld [vmem:[#allocation11 + $0x1f0] sm:$0xff]
      %v324 = vld [vmem:[#allocation11 + $0x1f8] sm:$0xff]
      %v325 = vld [vmem:[#allocation11 + $0x200] sm:$0xff]
      %v326 = vld [vmem:[#allocation11 + $0x208] sm:$0xff]
      %v327 = vld [vmem:[#allocation11 + $0x210] sm:$0xff]
      %v328 = vld [vmem:[#allocation11 + $0x218] sm:$0xff]
      %v329 = vld [vmem:[#allocation11 + $0x220] sm:$0xff]
      %v330 = vld [vmem:[#allocation11 + $0x228] sm:$0xff]
      %v331 = vld [vmem:[#allocation11 + $0x230] sm:$0xff]
      %v332 = vld [vmem:[#allocation11 + $0x238] sm:$0xff]
      %v333 = vld [vmem:[#allocation11 + $0x240] sm:$0xff]
      %v334 = vld [vmem:[#allocation11 + $0x248] sm:$0xff]
      %v335 = vld [vmem:[#allocation11 + $0x250] sm:$0xff]
      %v336 = vld [vmem:[#allocation11 + $0x258] sm:$0xff]
      %v337 = vld [vmem:[#allocation11 + $0x260] sm:$0xff]
      %v338 = vld [vmem:[#allocation11 + $0x268] sm:$0xff]
      %v339 = vld [vmem:[#allocation11 + $0x270] sm:$0xff]
      %v340 = vld [vmem:[#allocation11 + $0x278] sm:$0xff]
      %v341 = vld [vmem:[#allocation11 + $0x280] sm:$0xff]
      %v342 = vld [vmem:[#allocation11 + $0x288] sm:$0xff]
      %v343 = vld [vmem:[#allocation11 + $0x290] sm:$0xff]
      %v344 = vld [vmem:[#allocation11 + $0x298] sm:$0xff]
      %v345 = vld [vmem:[#allocation11 + $0x2a0] sm:$0xff]
      %v346 = vld [vmem:[#allocation11 + $0x2a8] sm:$0xff]
      %v347 = vld [vmem:[#allocation11 + $0x2b0] sm:$0xff]
      %v348 = vld [vmem:[#allocation11 + $0x2b8] sm:$0xff]
      %v349 = vld [vmem:[#allocation11 + $0x2c0] sm:$0xff]
      %v350 = vld [vmem:[#allocation11 + $0x2c8] sm:$0xff]
      %v351 = vld [vmem:[#allocation11 + $0x2d0] sm:$0xff]
      %v352 = vld [vmem:[#allocation11 + $0x2d8] sm:$0xff]
      %v353 = vld [vmem:[#allocation11 + $0x2e0] sm:$0xff]
      %v354 = vld [vmem:[#allocation11 + $0x2e8] sm:$0xff]
      %v355 = vld [vmem:[#allocation11 + $0x2f0] sm:$0xff]
      %v356 = vld [vmem:[#allocation11 + $0x2f8] sm:$0xff]
      %v357 = vld [vmem:[#allocation13] sm:$0xf]
      %v359 = vperm.slane %v357, 0
      %v360 = vperm.slane %v357, 1
      %v361 = vperm.slane %v357, 2
      %v362 = vperm.slane %v357, 3
      %v369 = vunpack.c.l.b16 %v259
      %v370 = vunpack.c.h.b16 %v259
      %v371 = vunpack.c.l.b16 %v260
      %v372 = vpack.c.b16 %v369, %v369
      %v373 = vpack.c.b16 %v370, %v370
      %v374 = vpack.c.b16 %v371, %v371
      %v474 = vunpack.c.l.b16 %v261
      %v475 = vunpack.c.h.b16 %v261
      %v476 = vunpack.c.l.b16 %v262
      %v477 = vunpack.c.h.b16 %v262
      %v478 = vunpack.c.l.b16 %v263
      %v479 = vunpack.c.h.b16 %v263
      %v480 = vunpack.c.l.b16 %v264
      %v481 = vunpack.c.h.b16 %v264
      %v482 = vunpack.c.l.b16 %v265
      %v483 = vunpack.c.h.b16 %v265
      %v484 = vunpack.c.l.b16 %v266
      %v485 = vunpack.c.h.b16 %v266
      %v486 = vunpack.c.l.b16 %v267
      %v487 = vunpack.c.h.b16 %v267
      %v488 = vunpack.c.l.b16 %v268
      %v489 = vunpack.c.h.b16 %v268
      %v490 = vunpack.c.l.b16 %v269
      %v491 = vunpack.c.h.b16 %v269
      %v492 = vunpack.c.l.b16 %v270
      %v493 = vunpack.c.h.b16 %v270
      %v494 = vunpack.c.l.b16 %v271
      %v495 = vunpack.c.h.b16 %v271
      %v496 = vunpack.c.l.b16 %v272
      %v497 = vunpack.c.h.b16 %v272
      %v498 = vunpack.c.l.b16 %v273
      %v499 = vunpack.c.h.b16 %v273
      %v500 = vunpack.c.l.b16 %v274
      %v501 = vunpack.c.h.b16 %v274
      %v502 = vunpack.c.l.b16 %v275
      %v503 = vunpack.c.h.b16 %v275
      %v504 = vunpack.c.l.b16 %v276
      %v505 = vunpack.c.h.b16 %v276
      %v506 = vunpack.c.l.b16 %v277
      %v507 = vunpack.c.h.b16 %v277
      %v508 = vunpack.c.l.b16 %v278
      %v509 = vunpack.c.h.b16 %v278
      %v510 = vunpack.c.l.b16 %v279
      %v511 = vunpack.c.h.b16 %v279
      %v512 = vunpack.c.l.b16 %v280
      %v513 = vunpack.c.h.b16 %v280
      %v514 = vunpack.c.l.b16 %v281
      %v515 = vunpack.c.h.b16 %v281
      %v516 = vunpack.c.l.b16 %v282
      %v517 = vunpack.c.h.b16 %v282
      %v518 = vunpack.c.l.b16 %v283
      %v519 = vunpack.c.h.b16 %v283
      %v520 = vunpack.c.l.b16 %v284
      %v521 = vunpack.c.h.b16 %v284
      %v522 = vunpack.c.l.b16 %v285
      %v523 = vunpack.c.h.b16 %v285
      %v524 = vunpack.c.l.b16 %v286
      %v525 = vunpack.c.h.b16 %v286
      %v526 = vunpack.c.l.b16 %v287
      %v527 = vunpack.c.h.b16 %v287
      %v528 = vunpack.c.l.b16 %v288
      %v529 = vunpack.c.h.b16 %v288
      %v530 = vunpack.c.l.b16 %v289
      %v531 = vunpack.c.h.b16 %v289
      %v532 = vunpack.c.l.b16 %v290
      %v533 = vunpack.c.h.b16 %v290
      %v534 = vunpack.c.l.b16 %v291
      %v535 = vunpack.c.h.b16 %v291
      %v536 = vunpack.c.l.b16 %v292
      %v537 = vunpack.c.h.b16 %v292
      %v538 = vunpack.c.l.b16 %v293
      %v539 = vunpack.c.h.b16 %v293
      %v540 = vunpack.c.l.b16 %v294
      %v541 = vunpack.c.h.b16 %v294
      %v542 = vunpack.c.l.b16 %v295
      %v543 = vunpack.c.h.b16 %v295
      %v544 = vunpack.c.l.b16 %v296
      %v545 = vunpack.c.h.b16 %v296
      %v546 = vunpack.c.l.b16 %v297
      %v547 = vunpack.c.h.b16 %v297
      %v548 = vunpack.c.l.b16 %v298
      %v549 = vunpack.c.h.b16 %v298
      %v550 = vunpack.c.l.b16 %v299
      %v551 = vunpack.c.h.b16 %v299
      %v552 = vunpack.c.l.b16 %v300
      %v553 = vunpack.c.h.b16 %v300
      %v554 = vunpack.c.l.b16 %v301
      %v555 = vunpack.c.h.b16 %v301
      %v556 = vunpack.c.l.b16 %v302
      %v557 = vunpack.c.h.b16 %v302
      %v558 = vunpack.c.l.b16 %v303
      %v559 = vunpack.c.h.b16 %v303
      %v560 = vunpack.c.l.b16 %v304
      %v561 = vunpack.c.h.b16 %v304
      %v562 = vunpack.c.l.b16 %v305
      %v563 = vunpack.c.h.b16 %v305
      %v564 = vunpack.c.l.b16 %v306
      %v565 = vunpack.c.h.b16 %v306
      %v566 = vunpack.c.l.b16 %v307
      %v567 = vunpack.c.h.b16 %v307
      %v568 = vunpack.c.l.b16 %v308
      %v569 = vunpack.c.h.b16 %v308
      %v570 = vunpack.c.l.b16 %v309
      %v571 = vunpack.c.h.b16 %v309
      %v572 = vunpack.c.l.b16 %v310
      %v573 = vunpack.c.h.b16 %v310
      %v574 = vunpack.c.l.b16 %v311
      %v575 = vunpack.c.h.b16 %v311
      %v576 = vunpack.c.l.b16 %v312
      %v577 = vunpack.c.h.b16 %v312
      %v578 = vunpack.c.l.b16 %v313
      %v579 = vunpack.c.h.b16 %v313
      %v580 = vunpack.c.l.b16 %v314
      %v581 = vunpack.c.h.b16 %v314
      %v582 = vunpack.c.l.b16 %v315
      %v583 = vunpack.c.h.b16 %v315
      %v584 = vunpack.c.l.b16 %v316
      %v585 = vunpack.c.h.b16 %v316
      %v586 = vunpack.c.l.b16 %v317
      %v587 = vunpack.c.h.b16 %v317
      %v588 = vunpack.c.l.b16 %v318
      %v589 = vunpack.c.h.b16 %v318
      %v590 = vunpack.c.l.b16 %v319
      %v591 = vunpack.c.h.b16 %v319
      %v592 = vunpack.c.l.b16 %v320
      %v593 = vunpack.c.h.b16 %v320
      %v594 = vunpack.c.l.b16 %v321
      %v595 = vunpack.c.h.b16 %v321
      %v596 = vunpack.c.l.b16 %v322
      %v597 = vunpack.c.h.b16 %v322
      %v598 = vunpack.c.l.b16 %v323
      %v599 = vunpack.c.h.b16 %v323
      %v600 = vunpack.c.l.b16 %v324
      %v601 = vunpack.c.h.b16 %v324
      %v602 = vunpack.c.l.b16 %v325
      %v603 = vunpack.c.h.b16 %v325
      %v604 = vunpack.c.l.b16 %v326
      %v605 = vunpack.c.h.b16 %v326
      %v606 = vunpack.c.l.b16 %v327
      %v607 = vunpack.c.h.b16 %v327
      %v608 = vunpack.c.l.b16 %v328
      %v609 = vunpack.c.h.b16 %v328
      %v610 = vunpack.c.l.b16 %v329
      %v611 = vunpack.c.h.b16 %v329
      %v612 = vunpack.c.l.b16 %v330
      %v613 = vunpack.c.h.b16 %v330
      %v614 = vunpack.c.l.b16 %v331
      %v615 = vunpack.c.h.b16 %v331
      %v616 = vunpack.c.l.b16 %v332
      %v617 = vunpack.c.h.b16 %v332
      %v618 = vunpack.c.l.b16 %v333
      %v619 = vunpack.c.h.b16 %v333
      %v620 = vunpack.c.l.b16 %v334
      %v621 = vunpack.c.h.b16 %v334
      %v622 = vunpack.c.l.b16 %v335
      %v623 = vunpack.c.h.b16 %v335
      %v624 = vunpack.c.l.b16 %v336
      %v625 = vunpack.c.h.b16 %v336
      %v626 = vunpack.c.l.b16 %v337
      %v627 = vunpack.c.h.b16 %v337
      %v628 = vunpack.c.l.b16 %v338
      %v629 = vunpack.c.h.b16 %v338
      %v630 = vunpack.c.l.b16 %v339
      %v631 = vunpack.c.h.b16 %v339
      %v632 = vunpack.c.l.b16 %v340
      %v633 = vunpack.c.h.b16 %v340
      %v634 = vunpack.c.l.b16 %v341
      %v635 = vunpack.c.h.b16 %v341
      %v636 = vunpack.c.l.b16 %v342
      %v637 = vunpack.c.h.b16 %v342
      %v638 = vunpack.c.l.b16 %v343
      %v639 = vunpack.c.h.b16 %v343
      %v640 = vunpack.c.l.b16 %v344
      %v641 = vunpack.c.h.b16 %v344
      %v642 = vunpack.c.l.b16 %v345
      %v643 = vunpack.c.h.b16 %v345
      %v644 = vunpack.c.l.b16 %v346
      %v645 = vunpack.c.h.b16 %v346
      %v646 = vunpack.c.l.b16 %v347
      %v647 = vunpack.c.h.b16 %v347
      %v648 = vunpack.c.l.b16 %v348
      %v649 = vunpack.c.h.b16 %v348
      %v650 = vunpack.c.l.b16 %v349
      %v651 = vunpack.c.h.b16 %v349
      %v652 = vunpack.c.l.b16 %v350
      %v653 = vunpack.c.h.b16 %v350
      %v654 = vunpack.c.l.b16 %v351
      %v655 = vunpack.c.h.b16 %v351
      %v656 = vunpack.c.l.b16 %v352
      %v657 = vunpack.c.h.b16 %v352
      %v658 = vunpack.c.l.b16 %v353
      %v659 = vunpack.c.h.b16 %v353
      %v660 = vunpack.c.l.b16 %v354
      %v661 = vunpack.c.h.b16 %v354
      %v662 = vunpack.c.l.b16 %v355
      %v663 = vunpack.c.h.b16 %v355
      %v664 = vunpack.c.l.b16 %v356
      %v665 = vunpack.c.h.b16 %v356
      %v666 = vpack.c.b16 %v478, %v474
      %v667 = vpack.c.b16 %v479, %v475
      %v668 = vpack.c.b16 %v480, %v476
      %v669 = vpack.c.b16 %v481, %v477
      %v670 = vpack.c.b16 %v486, %v482
      %v671 = vpack.c.b16 %v487, %v483
      %v672 = vpack.c.b16 %v488, %v484
      %v673 = vpack.c.b16 %v489, %v485
      %v674 = vpack.c.b16 %v494, %v490
      %v675 = vpack.c.b16 %v495, %v491
      %v676 = vpack.c.b16 %v496, %v492
      %v677 = vpack.c.b16 %v497, %v493
      %v678 = vpack.c.b16 %v502, %v498
      %v679 = vpack.c.b16 %v503, %v499
      %v680 = vpack.c.b16 %v504, %v500
      %v681 = vpack.c.b16 %v505, %v501
      %v682 = vpack.c.b16 %v510, %v506
      %v683 = vpack.c.b16 %v511, %v507
      %v684 = vpack.c.b16 %v512, %v508
      %v685 = vpack.c.b16 %v513, %v509
      %v686 = vpack.c.b16 %v518, %v514
      %v687 = vpack.c.b16 %v519, %v515
      %v688 = vpack.c.b16 %v520, %v516
      %v689 = vpack.c.b16 %v521, %v517
      %v690 = vpack.c.b16 %v526, %v522
      %v691 = vpack.c.b16 %v527, %v523
      %v692 = vpack.c.b16 %v528, %v524
      %v693 = vpack.c.b16 %v529, %v525
      %v694 = vpack.c.b16 %v534, %v530
      %v695 = vpack.c.b16 %v535, %v531
      %v696 = vpack.c.b16 %v536, %v532
      %v697 = vpack.c.b16 %v537, %v533
      %v698 = vpack.c.b16 %v542, %v538
      %v699 = vpack.c.b16 %v543, %v539
      %v700 = vpack.c.b16 %v544, %v540
      %v701 = vpack.c.b16 %v545, %v541
      %v702 = vpack.c.b16 %v550, %v546
      %v703 = vpack.c.b16 %v551, %v547
      %v704 = vpack.c.b16 %v552, %v548
      %v705 = vpack.c.b16 %v553, %v549
      %v706 = vpack.c.b16 %v558, %v554
      %v707 = vpack.c.b16 %v559, %v555
      %v708 = vpack.c.b16 %v560, %v556
      %v709 = vpack.c.b16 %v561, %v557
      %v710 = vpack.c.b16 %v566, %v562
      %v711 = vpack.c.b16 %v567, %v563
      %v712 = vpack.c.b16 %v568, %v564
      %v713 = vpack.c.b16 %v569, %v565
      %v714 = vpack.c.b16 %v574, %v570
      %v715 = vpack.c.b16 %v575, %v571
      %v716 = vpack.c.b16 %v576, %v572
      %v717 = vpack.c.b16 %v577, %v573
      %v718 = vpack.c.b16 %v582, %v578
      %v719 = vpack.c.b16 %v583, %v579
      %v720 = vpack.c.b16 %v584, %v580
      %v721 = vpack.c.b16 %v585, %v581
      %v722 = vpack.c.b16 %v590, %v586
      %v723 = vpack.c.b16 %v591, %v587
      %v724 = vpack.c.b16 %v592, %v588
      %v725 = vpack.c.b16 %v593, %v589
      %v726 = vpack.c.b16 %v598, %v594
      %v727 = vpack.c.b16 %v599, %v595
      %v728 = vpack.c.b16 %v600, %v596
      %v729 = vpack.c.b16 %v601, %v597
      %v730 = vpack.c.b16 %v606, %v602
      %v731 = vpack.c.b16 %v607, %v603
      %v732 = vpack.c.b16 %v608, %v604
      %v733 = vpack.c.b16 %v609, %v605
      %v734 = vpack.c.b16 %v614, %v610
      %v735 = vpack.c.b16 %v615, %v611
      %v736 = vpack.c.b16 %v616, %v612
      %v737 = vpack.c.b16 %v617, %v613
      %v738 = vpack.c.b16 %v622, %v618
      %v739 = vpack.c.b16 %v623, %v619
      %v740 = vpack.c.b16 %v624, %v620
      %v741 = vpack.c.b16 %v625, %v621
      %v742 = vpack.c.b16 %v630, %v626
      %v743 = vpack.c.b16 %v631, %v627
      %v744 = vpack.c.b16 %v632, %v628
      %v745 = vpack.c.b16 %v633, %v629
      %v746 = vpack.c.b16 %v638, %v634
      %v747 = vpack.c.b16 %v639, %v635
      %v748 = vpack.c.b16 %v640, %v636
      %v749 = vpack.c.b16 %v641, %v637
      %v750 = vpack.c.b16 %v646, %v642
      %v751 = vpack.c.b16 %v647, %v643
      %v752 = vpack.c.b16 %v648, %v644
      %v753 = vpack.c.b16 %v649, %v645
      %v754 = vpack.c.b16 %v654, %v650
      %v755 = vpack.c.b16 %v655, %v651
      %v756 = vpack.c.b16 %v656, %v652
      %v757 = vpack.c.b16 %v657, %v653
      %v758 = vpack.c.b16 %v662, %v658
      %v759 = vpack.c.b16 %v663, %v659
      %v760 = vpack.c.b16 %v664, %v660
      %v761 = vpack.c.b16 %v665, %v661
      %858 = vmatpush.bf16.msra.mxu0 %v694
      %859 = vmatpush.bf16.msra.mxu0 %v690
      %860 = vmatpush.bf16.msra.mxu0 %v686
      %861 = vmatpush.bf16.msra.mxu0 %v682
      %862 = vmatpush.bf16.msra.mxu0 %v678
      %863 = vmatpush.bf16.msra.mxu0 %v674
      %864 = vmatpush.bf16.msra.mxu0 %v670
      %865 = vmatpush.bf16.msra.mxu0 %v666
      %866 = vmatmul.bf16.gmra.mxu0 %v372
      %v867 = vpop.f32.mrf.mxu0
      %v868 = vadd.f32 %v359, %v867
      %v869 = vpop.f32.mrf.mxu0
      %870 = vdwg.mxu0
      %871 = vmatpush.bf16.msra.mxu0 %v726
      %872 = vmatpush.bf16.msra.mxu0 %v722
      %873 = vmatpush.bf16.msra.mxu0 %v718
      %874 = vmatpush.bf16.msra.mxu0 %v714
      %875 = vmatpush.bf16.msra.mxu0 %v710
      %876 = vmatpush.bf16.msra.mxu0 %v706
      %877 = vmatpush.bf16.msra.mxu0 %v702
      %878 = vmatpush.bf16.msra.mxu0 %v698
      %879 = vmatmul.bf16.gmra.mxu0 %v373
      %v880 = vpop.f32.mrf.mxu0
      %v881 = vadd.f32 %v868, %v880
      %v882 = vpop.f32.mrf.mxu0
      %883 = vdwg.mxu0
      %884 = vmatpush.bf16.msra.mxu0 %v758
      %885 = vmatpush.bf16.msra.mxu0 %v754
      %886 = vmatpush.bf16.msra.mxu0 %v750
      %887 = vmatpush.bf16.msra.mxu0 %v746
      %888 = vmatpush.bf16.msra.mxu0 %v742
      %889 = vmatpush.bf16.msra.mxu0 %v738
      %890 = vmatpush.bf16.msra.mxu0 %v734
      %891 = vmatpush.bf16.msra.mxu0 %v730
      %892 = vmatmul.bf16.gmra.mxu0 %v374
      %v893 = vpop.f32.mrf.mxu0
      %v894 = vadd.f32 %v881, %v893
      %v895 = vpop.f32.mrf.mxu0
      %896 = vdwg.mxu0
      %897 = vmatpush.bf16.msra.mxu0 %v695
      %898 = vmatpush.bf16.msra.mxu0 %v691
      %899 = vmatpush.bf16.msra.mxu0 %v687
      %900 = vmatpush.bf16.msra.mxu0 %v683
      %901 = vmatpush.bf16.msra.mxu0 %v679
      %902 = vmatpush.bf16.msra.mxu0 %v675
      %903 = vmatpush.bf16.msra.mxu0 %v671
      %904 = vmatpush.bf16.msra.mxu0 %v667
      %905 = vmatmul.bf16.gmra.mxu0 %v372
      %v906 = vpop.f32.mrf.mxu0
      %v907 = vadd.f32 %v360, %v906
      %v908 = vpop.f32.mrf.mxu0
      %909 = vdwg.mxu0
      %910 = vmatpush.bf16.msra.mxu0 %v727
      %911 = vmatpush.bf16.msra.mxu0 %v723
      %912 = vmatpush.bf16.msra.mxu0 %v719
      %913 = vmatpush.bf16.msra.mxu0 %v715
      %914 = vmatpush.bf16.msra.mxu0 %v711
      %915 = vmatpush.bf16.msra.mxu0 %v707
      %916 = vmatpush.bf16.msra.mxu0 %v703
      %917 = vmatpush.bf16.msra.mxu0 %v699
      %918 = vmatmul.bf16.gmra.mxu0 %v373
      %v919 = vpop.f32.mrf.mxu0
      %v920 = vadd.f32 %v907, %v919
      %v921 = vpop.f32.mrf.mxu0
      %922 = vdwg.mxu0
      %923 = vmatpush.bf16.msra.mxu0 %v759
      %924 = vmatpush.bf16.msra.mxu0 %v755
      %925 = vmatpush.bf16.msra.mxu0 %v751
      %926 = vmatpush.bf16.msra.mxu0 %v747
      %927 = vmatpush.bf16.msra.mxu0 %v743
      %928 = vmatpush.bf16.msra.mxu0 %v739
      %929 = vmatpush.bf16.msra.mxu0 %v735
      %930 = vmatpush.bf16.msra.mxu0 %v731
      %931 = vmatmul.bf16.gmra.mxu0 %v374
      %v932 = vpop.f32.mrf.mxu0
      %v933 = vadd.f32 %v920, %v932
      %v934 = vpop.f32.mrf.mxu0
      %935 = vdwg.mxu0
      %936 = vmatpush.bf16.msra.mxu0 %v696
      %937 = vmatpush.bf16.msra.mxu0 %v692
      %938 = vmatpush.bf16.msra.mxu0 %v688
      %939 = vmatpush.bf16.msra.mxu0 %v684
      %940 = vmatpush.bf16.msra.mxu0 %v680
      %941 = vmatpush.bf16.msra.mxu0 %v676
      %942 = vmatpush.bf16.msra.mxu0 %v672
      %943 = vmatpush.bf16.msra.mxu0 %v668
      %944 = vmatmul.bf16.gmra.mxu0 %v372
      %v945 = vpop.f32.mrf.mxu0
      %v946 = vadd.f32 %v361, %v945
      %v947 = vpop.f32.mrf.mxu0
      %948 = vdwg.mxu0
      %949 = vmatpush.bf16.msra.mxu0 %v728
      %950 = vmatpush.bf16.msra.mxu0 %v724
      %951 = vmatpush.bf16.msra.mxu0 %v720
      %952 = vmatpush.bf16.msra.mxu0 %v716
      %953 = vmatpush.bf16.msra.mxu0 %v712
      %954 = vmatpush.bf16.msra.mxu0 %v708
      %955 = vmatpush.bf16.msra.mxu0 %v704
      %956 = vmatpush.bf16.msra.mxu0 %v700
      %957 = vmatmul.bf16.gmra.mxu0 %v373
      %v958 = vpop.f32.mrf.mxu0
      %v959 = vadd.f32 %v946, %v958
      %v960 = vpop.f32.mrf.mxu0
      %961 = vdwg.mxu0
      %962 = vmatpush.bf16.msra.mxu0 %v760
      %963 = vmatpush.bf16.msra.mxu0 %v756
      %964 = vmatpush.bf16.msra.mxu0 %v752
      %965 = vmatpush.bf16.msra.mxu0 %v748
      %966 = vmatpush.bf16.msra.mxu0 %v744
      %967 = vmatpush.bf16.msra.mxu0 %v740
      %968 = vmatpush.bf16.msra.mxu0 %v736
      %969 = vmatpush.bf16.msra.mxu0 %v732
      %970 = vmatmul.bf16.gmra.mxu0 %v374
      %v971 = vpop.f32.mrf.mxu0
      %v972 = vadd.f32 %v959, %v971
      %v973 = vpop.f32.mrf.mxu0
      %974 = vdwg.mxu0
      %975 = vmatpush.bf16.msra.mxu0 %v697
      %976 = vmatpush.bf16.msra.mxu0 %v693
      %977 = vmatpush.bf16.msra.mxu0 %v689
      %978 = vmatpush.bf16.msra.mxu0 %v685
      %979 = vmatpush.bf16.msra.mxu0 %v681
      %980 = vmatpush.bf16.msra.mxu0 %v677
      %981 = vmatpush.bf16.msra.mxu0 %v673
      %982 = vmatpush.bf16.msra.mxu0 %v669
      %983 = vmatmul.bf16.gmra.mxu0 %v372
      %v984 = vpop.f32.mrf.mxu0
      %v985 = vadd.f32 %v362, %v984
      %v986 = vpop.f32.mrf.mxu0
      %987 = vdwg.mxu0
      %988 = vmatpush.bf16.msra.mxu0 %v729
      %989 = vmatpush.bf16.msra.mxu0 %v725
      %990 = vmatpush.bf16.msra.mxu0 %v721
      %991 = vmatpush.bf16.msra.mxu0 %v717
      %992 = vmatpush.bf16.msra.mxu0 %v713
      %993 = vmatpush.bf16.msra.mxu0 %v709
      %994 = vmatpush.bf16.msra.mxu0 %v705
      %995 = vmatpush.bf16.msra.mxu0 %v701
      %996 = vmatmul.bf16.gmra.mxu0 %v373
      %v997 = vpop.f32.mrf.mxu0
      %v998 = vadd.f32 %v985, %v997
      %v999 = vpop.f32.mrf.mxu0
      %1000 = vdwg.mxu0
      %1001 = vmatpush.bf16.msra.mxu0 %v761
      %1002 = vmatpush.bf16.msra.mxu0 %v757
      %1003 = vmatpush.bf16.msra.mxu0 %v753
      %1004 = vmatpush.bf16.msra.mxu0 %v749
      %1005 = vmatpush.bf16.msra.mxu0 %v745
      %1006 = vmatpush.bf16.msra.mxu0 %v741
      %1007 = vmatpush.bf16.msra.mxu0 %v737
      %1008 = vmatpush.bf16.msra.mxu0 %v733
      %1009 = vmatmul.bf16.gmra.mxu0 %v374
      %v1010 = vpop.f32.mrf.mxu0
      %v1011 = vadd.f32 %v998, %v1010
      %v1012 = vpop.f32.mrf.mxu0
      %1013 = vdwg.mxu0
      %v1014 = vxor.u32 %v894, 2147483648
      %v1015 = vmul.f32 %v1014, 1.442695
      %v1016 = vpow.pop %v1015
      %v1017 = vadd.f32 %v1016, 1.0
      %v1018 = vrcp.pop %v1017
      %v1019 = vmul.f32 %v1017, %v1018
      %v1020 = vsub.f32 1.0, %v1019
      %v1021 = vmul.f32 %v1018, %v1020
      %v1022 = vadd.f32 %v1018, %v1021
      %vm1023 = vweird.f32 %v1017
      %vm1024 = vweird.f32 %v1018
      %vm1025 = vmor %vm1023, %vm1024
      %v1026 = vsel %vm1025, %v1018, %v1022
      %v1027 = vand.u32 2147483647, %v1017
      %vm1028 = vcmp.eq.f32.partialorder %v1027, 8.507059e+37
      %v1029 = vand.u32 %v1017, 2147483648
      %v1030 = vor.u32 1.1754944e-38, %v1029
      %v1031 = vsel %vm1028, %v1030, %v1026
      %v1032 = vmul.f32 1.0, %v1031
      %v1033 = vxor.u32 %v933, 2147483648
      %v1034 = vmul.f32 %v1033, 1.442695
      %v1035 = vpow.pop %v1034
      %v1036 = vadd.f32 %v1035, 1.0
      %v1037 = vrcp.pop %v1036
      %v1038 = vmul.f32 %v1036, %v1037
      %v1039 = vsub.f32 1.0, %v1038
      %v1040 = vmul.f32 %v1037, %v1039
      %v1041 = vadd.f32 %v1037, %v1040
      %vm1042 = vweird.f32 %v1036
      %vm1043 = vweird.f32 %v1037
      %vm1044 = vmor %vm1042, %vm1043
      %v1045 = vsel %vm1044, %v1037, %v1041
      %v1046 = vand.u32 2147483647, %v1036
      %vm1047 = vcmp.eq.f32.partialorder %v1046, 8.507059e+37
      %v1048 = vand.u32 %v1036, 2147483648
      %v1049 = vor.u32 1.1754944e-38, %v1048
      %v1050 = vsel %vm1047, %v1049, %v1045
      %v1051 = vmul.f32 1.0, %v1050
      %v1052 = vtanh.pop %v972
      %v1053 = vxor.u32 %v1011, 2147483648
      %v1054 = vmul.f32 %v1053, 1.442695
      %v1055 = vpow.pop %v1054
      %v1056 = vadd.f32 %v1055, 1.0
      %v1057 = vrcp.pop %v1056
      %v1058 = vmul.f32 %v1056, %v1057
      %v1059 = vsub.f32 1.0, %v1058
      %v1060 = vmul.f32 %v1057, %v1059
      %v1061 = vadd.f32 %v1057, %v1060
      %vm1062 = vweird.f32 %v1056
      %vm1063 = vweird.f32 %v1057
      %vm1064 = vmor %vm1062, %vm1063
      %v1065 = vsel %vm1064, %v1057, %v1061
      %v1066 = vand.u32 2147483647, %v1056
      %vm1067 = vcmp.eq.f32.partialorder %v1066, 8.507059e+37
      %v1068 = vand.u32 %v1056, 2147483648
      %v1069 = vor.u32 1.1754944e-38, %v1068
      %v1070 = vsel %vm1067, %v1069, %v1065
      %v1071 = vmul.f32 1.0, %v1070
      %v1072 = vld [vmem:[#allocation3] sm:$0xff]
      %v1073 = vmul.f32 %v1051, %v1072
      %v1074 = vmul.f32 %v1032, %v1052
      %v1075 = vadd.f32 %v1073, %v1074
      %v1076 = vtanh.pop %v1075
      %v1077 = vmul.f32 %v1071, %v1076
      %1078 = vst [vmem:[#allocation3] sm:$0xff] %v1075
      %v1079 = vpack.c.bf16 %v1077, %v1077
      %1080 = vst [vmem:[#allocation2 + $0x4] sm:$0xf] %v1079
      %v1081 = vld [vmem:[#allocation5] sm:$0xf]
      %v1082 = vld [vmem:[#allocation5 + $0x4] sm:$0xf]
      %v1083 = vld [vmem:[#allocation5 + $0x8] sm:$0xf]
      %v1084 = vld [vmem:[#allocation5 + $0xc] sm:$0xf]
      %v1085 = vld [vmem:[#allocation5 + $0x10] sm:$0xf]
      %v1086 = vld [vmem:[#allocation5 + $0x14] sm:$0xf]
      %v1087 = vld [vmem:[#allocation5 + $0x18] sm:$0xf]
      %v1088 = vld [vmem:[#allocation5 + $0x1c] sm:$0xf]
      %v1089 = vld [vmem:[#allocation5 + $0x20] sm:$0xf]
      %v1090 = vld [vmem:[#allocation5 + $0x24] sm:$0xf]
      %v1091 = vld [vmem:[#allocation5 + $0x28] sm:$0xf]
      %v1092 = vld [vmem:[#allocation5 + $0x2c] sm:$0xf]
      %v1093 = vld [vmem:[#allocation5 + $0x30] sm:$0xf]
      %v1094 = vld [vmem:[#allocation5 + $0x34] sm:$0xf]
      %v1095 = vld [vmem:[#allocation5 + $0x38] sm:$0xf]
      %v1096 = vld [vmem:[#allocation5 + $0x3c] sm:$0xf]
      %v1097 = vld [vmem:[#allocation5 + $0x40] sm:$0xf]
      %v1098 = vld [vmem:[#allocation5 + $0x44] sm:$0xf]
      %v1099 = vld [vmem:[#allocation5 + $0x48] sm:$0xf]
      %v1100 = vld [vmem:[#allocation5 + $0x4c] sm:$0xf]
      %v1101 = vld [vmem:[#allocation5 + $0x50] sm:$0xf]
      %v1102 = vld [vmem:[#allocation5 + $0x54] sm:$0xf]
      %v1103 = vld [vmem:[#allocation5 + $0x58] sm:$0xf]
      %v1104 = vld [vmem:[#allocation5 + $0x5c] sm:$0xf]
      %v1105 = vld [vmem:[#allocation5 + $0x60] sm:$0xf]
      %v1106 = vld [vmem:[#allocation5 + $0x64] sm:$0xf]
      %v1107 = vld [vmem:[#allocation5 + $0x68] sm:$0xf]
      %v1108 = vld [vmem:[#allocation5 + $0x6c] sm:$0xf]
      %v1109 = vld [vmem:[#allocation5 + $0x70] sm:$0xf]
      %v1110 = vld [vmem:[#allocation5 + $0x74] sm:$0xf]
      %v1111 = vld [vmem:[#allocation5 + $0x78] sm:$0xf]
      %v1112 = vld [vmem:[#allocation5 + $0x7c] sm:$0xf]
      %v1113 = vld [vmem:[#allocation5 + $0x80] sm:$0xf]
      %v1114 = vld [vmem:[#allocation5 + $0x84] sm:$0xf]
      %v1115 = vld [vmem:[#allocation5 + $0x88] sm:$0xf]
      %v1116 = vld [vmem:[#allocation5 + $0x8c] sm:$0xf]
      %v1117 = vld [vmem:[#allocation5 + $0x90] sm:$0xf]
      %v1118 = vld [vmem:[#allocation5 + $0x94] sm:$0xf]
      %v1119 = vld [vmem:[#allocation5 + $0x98] sm:$0xf]
      %v1120 = vld [vmem:[#allocation5 + $0x9c] sm:$0xf]
      %v1121 = vld [vmem:[#allocation5 + $0xa0] sm:$0xf]
      %v1122 = vld [vmem:[#allocation5 + $0xa4] sm:$0xf]
      %v1123 = vld [vmem:[#allocation5 + $0xa8] sm:$0xf]
      %v1124 = vld [vmem:[#allocation5 + $0xac] sm:$0xf]
      %v1125 = vld [vmem:[#allocation5 + $0xb0] sm:$0xf]
      %v1126 = vld [vmem:[#allocation5 + $0xb4] sm:$0xf]
      %v1127 = vld [vmem:[#allocation5 + $0xb8] sm:$0xf]
      %v1128 = vld [vmem:[#allocation5 + $0xbc] sm:$0xf]
      %v1129 = vld [vmem:[#allocation5 + $0xc0] sm:$0xf]
      %v1130 = vld [vmem:[#allocation5 + $0xc4] sm:$0xf]
      %v1131 = vld [vmem:[#allocation5 + $0xc8] sm:$0xf]
      %v1132 = vld [vmem:[#allocation5 + $0xcc] sm:$0xf]
      %v1133 = vld [vmem:[#allocation5 + $0xd0] sm:$0xf]
      %v1134 = vld [vmem:[#allocation5 + $0xd4] sm:$0xf]
      %v1135 = vld [vmem:[#allocation5 + $0xd8] sm:$0xf]
      %v1136 = vld [vmem:[#allocation5 + $0xdc] sm:$0xf]
      %v1137 = vld [vmem:[#allocation5 + $0xe0] sm:$0xf]
      %v1138 = vld [vmem:[#allocation5 + $0xe4] sm:$0xf]
      %v1139 = vld [vmem:[#allocation5 + $0xe8] sm:$0xf]
      %v1140 = vld [vmem:[#allocation5 + $0xec] sm:$0xf]
      %v1141 = vld [vmem:[#allocation5 + $0xf0] sm:$0xf]
      %v1142 = vld [vmem:[#allocation5 + $0xf4] sm:$0xf]
      %v1143 = vld [vmem:[#allocation5 + $0xf8] sm:$0xf]
      %v1144 = vld [vmem:[#allocation5 + $0xfc] sm:$0xf]
      %v1145 = vld [vmem:[#allocation5 + $0x100] sm:$0xf]
      %v1146 = vld [vmem:[#allocation5 + $0x104] sm:$0xf]
      %v1147 = vld [vmem:[#allocation5 + $0x108] sm:$0xf]
      %v1148 = vld [vmem:[#allocation5 + $0x10c] sm:$0xf]
      %v1149 = vld [vmem:[#allocation5 + $0x110] sm:$0xf]
      %v1150 = vld [vmem:[#allocation5 + $0x114] sm:$0xf]
      %v1151 = vld [vmem:[#allocation5 + $0x118] sm:$0xf]
      %v1152 = vld [vmem:[#allocation5 + $0x11c] sm:$0xf]
      %v1153 = vld [vmem:[#allocation5 + $0x120] sm:$0xf]
      %v1154 = vld [vmem:[#allocation5 + $0x124] sm:$0xf]
      %v1155 = vld [vmem:[#allocation5 + $0x128] sm:$0xf]
      %v1156 = vld [vmem:[#allocation5 + $0x12c] sm:$0xf]
      %v1157 = vld [vmem:[#allocation5 + $0x130] sm:$0xf]
      %v1158 = vld [vmem:[#allocation5 + $0x134] sm:$0xf]
      %v1159 = vld [vmem:[#allocation5 + $0x138] sm:$0xf]
      %v1160 = vld [vmem:[#allocation5 + $0x13c] sm:$0xf]
      %v1161 = vld [vmem:[#allocation5 + $0x140] sm:$0xf]
      %v1162 = vld [vmem:[#allocation5 + $0x144] sm:$0xf]
      %v1163 = vld [vmem:[#allocation5 + $0x148] sm:$0xf]
      %v1164 = vld [vmem:[#allocation5 + $0x14c] sm:$0xf]
      %v1165 = vld [vmem:[#allocation5 + $0x150] sm:$0xf]
      %v1166 = vld [vmem:[#allocation5 + $0x154] sm:$0xf]
      %v1167 = vld [vmem:[#allocation5 + $0x158] sm:$0xf]
      %v1168 = vld [vmem:[#allocation5 + $0x15c] sm:$0xf]
      %v1169 = vld [vmem:[#allocation5 + $0x160] sm:$0xf]
      %v1170 = vld [vmem:[#allocation5 + $0x164] sm:$0xf]
      %v1171 = vld [vmem:[#allocation5 + $0x168] sm:$0xf]
      %v1172 = vld [vmem:[#allocation5 + $0x16c] sm:$0xf]
      %v1173 = vld [vmem:[#allocation5 + $0x170] sm:$0xf]
      %v1174 = vld [vmem:[#allocation5 + $0x174] sm:$0xf]
      %v1175 = vld [vmem:[#allocation5 + $0x178] sm:$0xf]
      %v1176 = vld [vmem:[#allocation5 + $0x17c] sm:$0xf]
      %v1177 = vld [vmem:[#allocation5 + $0x180] sm:$0xf]
      %v1178 = vld [vmem:[#allocation5 + $0x184] sm:$0xf]
      %v1179 = vld [vmem:[#allocation5 + $0x188] sm:$0xf]
      %v1180 = vld [vmem:[#allocation5 + $0x18c] sm:$0xf]
      %v1181 = vld [vmem:[#allocation5 + $0x190] sm:$0xf]
      %v1182 = vld [vmem:[#allocation5 + $0x194] sm:$0xf]
      %v1183 = vld [vmem:[#allocation5 + $0x198] sm:$0xf]
      %v1184 = vld [vmem:[#allocation5 + $0x19c] sm:$0xf]
      %v1185 = vld [vmem:[#allocation5 + $0x1a0] sm:$0xf]
      %v1186 = vld [vmem:[#allocation5 + $0x1a4] sm:$0xf]
      %v1187 = vld [vmem:[#allocation5 + $0x1a8] sm:$0xf]
      %v1188 = vld [vmem:[#allocation5 + $0x1ac] sm:$0xf]
      %v1189 = vld [vmem:[#allocation5 + $0x1b0] sm:$0xf]
      %v1190 = vld [vmem:[#allocation5 + $0x1b4] sm:$0xf]
      %v1191 = vld [vmem:[#allocation5 + $0x1b8] sm:$0xf]
      %v1192 = vld [vmem:[#allocation5 + $0x1bc] sm:$0xf]
      %v1193 = vld [vmem:[#allocation5 + $0x1c0] sm:$0xf]
      %v1194 = vld [vmem:[#allocation5 + $0x1c4] sm:$0xf]
      %v1195 = vld [vmem:[#allocation5 + $0x1c8] sm:$0xf]
      %v1196 = vld [vmem:[#allocation5 + $0x1cc] sm:$0xf]
      %v1197 = vld [vmem:[#allocation5 + $0x1d0] sm:$0xf]
      %v1198 = vld [vmem:[#allocation5 + $0x1d4] sm:$0xf]
      %v1199 = vld [vmem:[#allocation5 + $0x1d8] sm:$0xf]
      %v1200 = vld [vmem:[#allocation5 + $0x1dc] sm:$0xf]
      %v1201 = vld [vmem:[#allocation5 + $0x1e0] sm:$0xf]
      %v1202 = vld [vmem:[#allocation5 + $0x1e4] sm:$0xf]
      %v1203 = vld [vmem:[#allocation5 + $0x1e8] sm:$0xf]
      %v1204 = vld [vmem:[#allocation5 + $0x1ec] sm:$0xf]
      %v1205 = vld [vmem:[#allocation5 + $0x1f0] sm:$0xf]
      %v1206 = vld [vmem:[#allocation5 + $0x1f4] sm:$0xf]
      %v1207 = vld [vmem:[#allocation5 + $0x1f8] sm:$0xf]
      %v1208 = vld [vmem:[#allocation5 + $0x1fc] sm:$0xf]
      %v1209 = vld [vmem:[#allocation14] sm:$0xf]
      %v1210 = vld [vmem:[#allocation14 + $0x4] sm:$0xf]
      %v1211 = vld [vmem:[#allocation14 + $0x8] sm:$0xf]
      %v1212 = vld [vmem:[#allocation14 + $0xc] sm:$0xf]
      %v1213 = vld [vmem:[#allocation14 + $0x10] sm:$0xf]
      %v1214 = vld [vmem:[#allocation14 + $0x14] sm:$0xf]
      %v1215 = vld [vmem:[#allocation14 + $0x18] sm:$0xf]
      %v1216 = vld [vmem:[#allocation14 + $0x1c] sm:$0xf]
      %v1217 = vld [vmem:[#allocation14 + $0x20] sm:$0xf]
      %v1218 = vld [vmem:[#allocation14 + $0x24] sm:$0xf]
      %v1219 = vld [vmem:[#allocation14 + $0x28] sm:$0xf]
      %v1220 = vld [vmem:[#allocation14 + $0x2c] sm:$0xf]
      %v1221 = vld [vmem:[#allocation14 + $0x30] sm:$0xf]
      %v1222 = vld [vmem:[#allocation14 + $0x34] sm:$0xf]
      %v1223 = vld [vmem:[#allocation14 + $0x38] sm:$0xf]
      %v1224 = vld [vmem:[#allocation14 + $0x3c] sm:$0xf]
      %v1241 = vunpack.c.l.b16 %v1209
      %v1242 = vunpack.c.l.b16 %v1210
      %v1243 = vunpack.c.l.b16 %v1211
      %v1244 = vunpack.c.l.b16 %v1212
      %v1245 = vunpack.c.l.b16 %v1213
      %v1246 = vunpack.c.l.b16 %v1214
      %v1247 = vunpack.c.l.b16 %v1215
      %v1248 = vunpack.c.l.b16 %v1216
      %v1249 = vunpack.c.l.b16 %v1217
      %v1250 = vunpack.c.l.b16 %v1218
      %v1251 = vunpack.c.l.b16 %v1219
      %v1252 = vunpack.c.l.b16 %v1220
      %v1253 = vunpack.c.l.b16 %v1221
      %v1254 = vunpack.c.l.b16 %v1222
      %v1255 = vunpack.c.l.b16 %v1223
      %v1256 = vunpack.c.l.b16 %v1224
      %v1257 = vpack.c.b16 %v1242, %v1241
      %v1258 = vpack.c.b16 %v1244, %v1243
      %v1259 = vpack.c.b16 %v1246, %v1245
      %v1260 = vpack.c.b16 %v1248, %v1247
      %v1261 = vpack.c.b16 %v1250, %v1249
      %v1262 = vpack.c.b16 %v1252, %v1251
      %v1263 = vpack.c.b16 %v1254, %v1253
      %v1264 = vpack.c.b16 %v1256, %v1255
      %1273 = vmatpush.bf16.msra.mxu0 %v1264
      %1274 = vmatpush.bf16.msra.mxu0 %v1263
      %1275 = vmatpush.bf16.msra.mxu0 %v1262
      %1276 = vmatpush.bf16.msra.mxu0 %v1261
      %1277 = vmatpush.bf16.msra.mxu0 %v1260
      %1278 = vmatpush.bf16.msra.mxu0 %v1259
      %1279 = vmatpush.bf16.msra.mxu0 %v1258
      %1280 = vmatpush.bf16.msra.mxu0 %v1257
      %1281 = vmatmul.bf16.gmra.mxu0 %v1079
      %v1282 = vpop.f32.mrf.mxu0
      %v1283 = vadd.f32 0.0, %v1282
      %v1284 = vpop.f32.mrf.mxu0
      %1285 = vdwg.mxu0
      %v1287 = vrot.slane %v1283, 1
      %v1288 = vrot.slane %v1283, 2
      %v1289 = vrot.slane %v1283, 3
      %v1290 = vrot.slane %v1283, 4
      %v1291 = vrot.slane %v1283, 5
      %v1292 = vrot.slane %v1283, 6
      %v1293 = vrot.slane %v1283, 7
      %v1301 = vpack.c.bf16 %v1283, %v1283
      %v1302 = vpack.c.bf16 %v1287, %v1287
      %v1303 = vpack.c.bf16 %v1288, %v1288
      %v1304 = vpack.c.bf16 %v1289, %v1289
      %v1305 = vpack.c.bf16 %v1290, %v1290
      %v1306 = vpack.c.bf16 %v1291, %v1291
      %v1307 = vpack.c.bf16 %v1292, %v1292
      %v1308 = vpack.c.bf16 %v1293, %v1293
      %v1325 = vunpack.c.l.b16 %v1081
      %v1326 = vunpack.c.l.b16 %v1082
      %v1327 = vunpack.c.l.b16 %v1083
      %v1328 = vunpack.c.l.b16 %v1084
      %v1329 = vunpack.c.l.b16 %v1085
      %v1330 = vunpack.c.l.b16 %v1086
      %v1331 = vunpack.c.l.b16 %v1087
      %v1332 = vunpack.c.l.b16 %v1088
      %v1333 = vunpack.c.l.b16 %v1089
      %v1334 = vunpack.c.l.b16 %v1090
      %v1335 = vunpack.c.l.b16 %v1091
      %v1336 = vunpack.c.l.b16 %v1092
      %v1337 = vunpack.c.l.b16 %v1093
      %v1338 = vunpack.c.l.b16 %v1094
      %v1339 = vunpack.c.l.b16 %v1095
      %v1340 = vunpack.c.l.b16 %v1096
      %v1341 = vpack.c.b16 %v1326, %v1325
      %v1342 = vpack.c.b16 %v1328, %v1327
      %v1343 = vpack.c.b16 %v1330, %v1329
      %v1344 = vpack.c.b16 %v1332, %v1331
      %v1345 = vpack.c.b16 %v1334, %v1333
      %v1346 = vpack.c.b16 %v1336, %v1335
      %v1347 = vpack.c.b16 %v1338, %v1337
      %v1348 = vpack.c.b16 %v1340, %v1339
      %1357 = vmatpush.bf16.xpose.msra.mxu0 %v1348
      %1358 = vmatpush.bf16.xpose.msra.mxu0 %v1347
      %1359 = vmatpush.bf16.xpose.msra.mxu0 %v1346
      %1360 = vmatpush.bf16.xpose.msra.mxu0 %v1345
      %1361 = vmatpush.bf16.xpose.msra.mxu0 %v1344
      %1362 = vmatpush.bf16.xpose.msra.mxu0 %v1343
      %1363 = vmatpush.bf16.xpose.msra.mxu0 %v1342
      %1364 = vmatpush.bf16.xpose.msra.mxu0 %v1341
      %1365 = vmatmul.bf16.gmra.mxu0 %v1301
      %v1366 = vpop.f32.mrf.mxu0
      %v1367 = vadd.f32 0.0, %v1366
      %v1368 = vpop.f32.mrf.mxu0
      %1369 = vdwg.mxu0
      %v1386 = vunpack.c.l.b16 %v1097
      %v1387 = vunpack.c.l.b16 %v1098
      %v1388 = vunpack.c.l.b16 %v1099
      %v1389 = vunpack.c.l.b16 %v1100
      %v1390 = vunpack.c.l.b16 %v1101
      %v1391 = vunpack.c.l.b16 %v1102
      %v1392 = vunpack.c.l.b16 %v1103
      %v1393 = vunpack.c.l.b16 %v1104
      %v1394 = vunpack.c.l.b16 %v1105
      %v1395 = vunpack.c.l.b16 %v1106
      %v1396 = vunpack.c.l.b16 %v1107
      %v1397 = vunpack.c.l.b16 %v1108
      %v1398 = vunpack.c.l.b16 %v1109
      %v1399 = vunpack.c.l.b16 %v1110
      %v1400 = vunpack.c.l.b16 %v1111
      %v1401 = vunpack.c.l.b16 %v1112
      %v1402 = vpack.c.b16 %v1387, %v1386
      %v1403 = vpack.c.b16 %v1389, %v1388
      %v1404 = vpack.c.b16 %v1391, %v1390
      %v1405 = vpack.c.b16 %v1393, %v1392
      %v1406 = vpack.c.b16 %v1395, %v1394
      %v1407 = vpack.c.b16 %v1397, %v1396
      %v1408 = vpack.c.b16 %v1399, %v1398
      %v1409 = vpack.c.b16 %v1401, %v1400
      %1418 = vmatpush.bf16.xpose.msra.mxu0 %v1409
      %1419 = vmatpush.bf16.xpose.msra.mxu0 %v1408
      %1420 = vmatpush.bf16.xpose.msra.mxu0 %v1407
      %1421 = vmatpush.bf16.xpose.msra.mxu0 %v1406
      %1422 = vmatpush.bf16.xpose.msra.mxu0 %v1405
      %1423 = vmatpush.bf16.xpose.msra.mxu0 %v1404
      %1424 = vmatpush.bf16.xpose.msra.mxu0 %v1403
      %1425 = vmatpush.bf16.xpose.msra.mxu0 %v1402
      %1426 = vmatmul.bf16.gmra.mxu0 %v1302
      %v1427 = vpop.f32.mrf.mxu0
      %v1428 = vadd.f32 0.0, %v1427
      %v1429 = vpop.f32.mrf.mxu0
      %1430 = vdwg.mxu0
      %v1447 = vunpack.c.l.b16 %v1113
      %v1448 = vunpack.c.l.b16 %v1114
      %v1449 = vunpack.c.l.b16 %v1115
      %v1450 = vunpack.c.l.b16 %v1116
      %v1451 = vunpack.c.l.b16 %v1117
      %v1452 = vunpack.c.l.b16 %v1118
      %v1453 = vunpack.c.l.b16 %v1119
      %v1454 = vunpack.c.l.b16 %v1120
      %v1455 = vunpack.c.l.b16 %v1121
      %v1456 = vunpack.c.l.b16 %v1122
      %v1457 = vunpack.c.l.b16 %v1123
      %v1458 = vunpack.c.l.b16 %v1124
      %v1459 = vunpack.c.l.b16 %v1125
      %v1460 = vunpack.c.l.b16 %v1126
      %v1461 = vunpack.c.l.b16 %v1127
      %v1462 = vunpack.c.l.b16 %v1128
      %v1463 = vpack.c.b16 %v1448, %v1447
      %v1464 = vpack.c.b16 %v1450, %v1449
      %v1465 = vpack.c.b16 %v1452, %v1451
      %v1466 = vpack.c.b16 %v1454, %v1453
      %v1467 = vpack.c.b16 %v1456, %v1455
      %v1468 = vpack.c.b16 %v1458, %v1457
      %v1469 = vpack.c.b16 %v1460, %v1459
      %v1470 = vpack.c.b16 %v1462, %v1461
      %1479 = vmatpush.bf16.xpose.msra.mxu0 %v1470
      %1480 = vmatpush.bf16.xpose.msra.mxu0 %v1469
      %1481 = vmatpush.bf16.xpose.msra.mxu0 %v1468
      %1482 = vmatpush.bf16.xpose.msra.mxu0 %v1467
      %1483 = vmatpush.bf16.xpose.msra.mxu0 %v1466
      %1484 = vmatpush.bf16.xpose.msra.mxu0 %v1465
      %1485 = vmatpush.bf16.xpose.msra.mxu0 %v1464
      %1486 = vmatpush.bf16.xpose.msra.mxu0 %v1463
      %1487 = vmatmul.bf16.gmra.mxu0 %v1303
      %v1488 = vpop.f32.mrf.mxu0
      %v1489 = vadd.f32 0.0, %v1488
      %v1490 = vpop.f32.mrf.mxu0
      %1491 = vdwg.mxu0
      %v1508 = vunpack.c.l.b16 %v1129
      %v1509 = vunpack.c.l.b16 %v1130
      %v1510 = vunpack.c.l.b16 %v1131
      %v1511 = vunpack.c.l.b16 %v1132
      %v1512 = vunpack.c.l.b16 %v1133
      %v1513 = vunpack.c.l.b16 %v1134
      %v1514 = vunpack.c.l.b16 %v1135
      %v1515 = vunpack.c.l.b16 %v1136
      %v1516 = vunpack.c.l.b16 %v1137
      %v1517 = vunpack.c.l.b16 %v1138
      %v1518 = vunpack.c.l.b16 %v1139
      %v1519 = vunpack.c.l.b16 %v1140
      %v1520 = vunpack.c.l.b16 %v1141
      %v1521 = vunpack.c.l.b16 %v1142
      %v1522 = vunpack.c.l.b16 %v1143
      %v1523 = vunpack.c.l.b16 %v1144
      %v1524 = vpack.c.b16 %v1509, %v1508
      %v1525 = vpack.c.b16 %v1511, %v1510
      %v1526 = vpack.c.b16 %v1513, %v1512
      %v1527 = vpack.c.b16 %v1515, %v1514
      %v1528 = vpack.c.b16 %v1517, %v1516
      %v1529 = vpack.c.b16 %v1519, %v1518
      %v1530 = vpack.c.b16 %v1521, %v1520
      %v1531 = vpack.c.b16 %v1523, %v1522
      %1540 = vmatpush.bf16.xpose.msra.mxu0 %v1531
      %1541 = vmatpush.bf16.xpose.msra.mxu0 %v1530
      %1542 = vmatpush.bf16.xpose.msra.mxu0 %v1529
      %1543 = vmatpush.bf16.xpose.msra.mxu0 %v1528
      %1544 = vmatpush.bf16.xpose.msra.mxu0 %v1527
      %1545 = vmatpush.bf16.xpose.msra.mxu0 %v1526
      %1546 = vmatpush.bf16.xpose.msra.mxu0 %v1525
      %1547 = vmatpush.bf16.xpose.msra.mxu0 %v1524
      %1548 = vmatmul.bf16.gmra.mxu0 %v1304
      %v1549 = vpop.f32.mrf.mxu0
      %v1550 = vadd.f32 0.0, %v1549
      %v1551 = vpop.f32.mrf.mxu0
      %1552 = vdwg.mxu0
      %v1569 = vunpack.c.l.b16 %v1145
      %v1570 = vunpack.c.l.b16 %v1146
      %v1571 = vunpack.c.l.b16 %v1147
      %v1572 = vunpack.c.l.b16 %v1148
      %v1573 = vunpack.c.l.b16 %v1149
      %v1574 = vunpack.c.l.b16 %v1150
      %v1575 = vunpack.c.l.b16 %v1151
      %v1576 = vunpack.c.l.b16 %v1152
      %v1577 = vunpack.c.l.b16 %v1153
      %v1578 = vunpack.c.l.b16 %v1154
      %v1579 = vunpack.c.l.b16 %v1155
      %v1580 = vunpack.c.l.b16 %v1156
      %v1581 = vunpack.c.l.b16 %v1157
      %v1582 = vunpack.c.l.b16 %v1158
      %v1583 = vunpack.c.l.b16 %v1159
      %v1584 = vunpack.c.l.b16 %v1160
      %v1585 = vpack.c.b16 %v1570, %v1569
      %v1586 = vpack.c.b16 %v1572, %v1571
      %v1587 = vpack.c.b16 %v1574, %v1573
      %v1588 = vpack.c.b16 %v1576, %v1575
      %v1589 = vpack.c.b16 %v1578, %v1577
      %v1590 = vpack.c.b16 %v1580, %v1579
      %v1591 = vpack.c.b16 %v1582, %v1581
      %v1592 = vpack.c.b16 %v1584, %v1583
      %1601 = vmatpush.bf16.xpose.msra.mxu0 %v1592
      %1602 = vmatpush.bf16.xpose.msra.mxu0 %v1591
      %1603 = vmatpush.bf16.xpose.msra.mxu0 %v1590
      %1604 = vmatpush.bf16.xpose.msra.mxu0 %v1589
      %1605 = vmatpush.bf16.xpose.msra.mxu0 %v1588
      %1606 = vmatpush.bf16.xpose.msra.mxu0 %v1587
      %1607 = vmatpush.bf16.xpose.msra.mxu0 %v1586
      %1608 = vmatpush.bf16.xpose.msra.mxu0 %v1585
      %1609 = vmatmul.bf16.gmra.mxu0 %v1305
      %v1610 = vpop.f32.mrf.mxu0
      %v1611 = vadd.f32 0.0, %v1610
      %v1612 = vpop.f32.mrf.mxu0
      %1613 = vdwg.mxu0
      %v1630 = vunpack.c.l.b16 %v1161
      %v1631 = vunpack.c.l.b16 %v1162
      %v1632 = vunpack.c.l.b16 %v1163
      %v1633 = vunpack.c.l.b16 %v1164
      %v1634 = vunpack.c.l.b16 %v1165
      %v1635 = vunpack.c.l.b16 %v1166
      %v1636 = vunpack.c.l.b16 %v1167
      %v1637 = vunpack.c.l.b16 %v1168
      %v1638 = vunpack.c.l.b16 %v1169
      %v1639 = vunpack.c.l.b16 %v1170
      %v1640 = vunpack.c.l.b16 %v1171
      %v1641 = vunpack.c.l.b16 %v1172
      %v1642 = vunpack.c.l.b16 %v1173
      %v1643 = vunpack.c.l.b16 %v1174
      %v1644 = vunpack.c.l.b16 %v1175
      %v1645 = vunpack.c.l.b16 %v1176
      %v1646 = vpack.c.b16 %v1631, %v1630
      %v1647 = vpack.c.b16 %v1633, %v1632
      %v1648 = vpack.c.b16 %v1635, %v1634
      %v1649 = vpack.c.b16 %v1637, %v1636
      %v1650 = vpack.c.b16 %v1639, %v1638
      %v1651 = vpack.c.b16 %v1641, %v1640
      %v1652 = vpack.c.b16 %v1643, %v1642
      %v1653 = vpack.c.b16 %v1645, %v1644
      %1662 = vmatpush.bf16.xpose.msra.mxu0 %v1653
      %1663 = vmatpush.bf16.xpose.msra.mxu0 %v1652
      %1664 = vmatpush.bf16.xpose.msra.mxu0 %v1651
      %1665 = vmatpush.bf16.xpose.msra.mxu0 %v1650
      %1666 = vmatpush.bf16.xpose.msra.mxu0 %v1649
      %1667 = vmatpush.bf16.xpose.msra.mxu0 %v1648
      %1668 = vmatpush.bf16.xpose.msra.mxu0 %v1647
      %1669 = vmatpush.bf16.xpose.msra.mxu0 %v1646
      %1670 = vmatmul.bf16.gmra.mxu0 %v1306
      %v1671 = vpop.f32.mrf.mxu0
      %v1672 = vadd.f32 0.0, %v1671
      %v1673 = vpop.f32.mrf.mxu0
      %1674 = vdwg.mxu0
      %v1691 = vunpack.c.l.b16 %v1177
      %v1692 = vunpack.c.l.b16 %v1178
      %v1693 = vunpack.c.l.b16 %v1179
      %v1694 = vunpack.c.l.b16 %v1180
      %v1695 = vunpack.c.l.b16 %v1181
      %v1696 = vunpack.c.l.b16 %v1182
      %v1697 = vunpack.c.l.b16 %v1183
      %v1698 = vunpack.c.l.b16 %v1184
      %v1699 = vunpack.c.l.b16 %v1185
      %v1700 = vunpack.c.l.b16 %v1186
      %v1701 = vunpack.c.l.b16 %v1187
      %v1702 = vunpack.c.l.b16 %v1188
      %v1703 = vunpack.c.l.b16 %v1189
      %v1704 = vunpack.c.l.b16 %v1190
      %v1705 = vunpack.c.l.b16 %v1191
      %v1706 = vunpack.c.l.b16 %v1192
      %v1707 = vpack.c.b16 %v1692, %v1691
      %v1708 = vpack.c.b16 %v1694, %v1693
      %v1709 = vpack.c.b16 %v1696, %v1695
      %v1710 = vpack.c.b16 %v1698, %v1697
      %v1711 = vpack.c.b16 %v1700, %v1699
      %v1712 = vpack.c.b16 %v1702, %v1701
      %v1713 = vpack.c.b16 %v1704, %v1703
      %v1714 = vpack.c.b16 %v1706, %v1705
      %1723 = vmatpush.bf16.xpose.msra.mxu0 %v1714
      %1724 = vmatpush.bf16.xpose.msra.mxu0 %v1713
      %1725 = vmatpush.bf16.xpose.msra.mxu0 %v1712
      %1726 = vmatpush.bf16.xpose.msra.mxu0 %v1711
      %1727 = vmatpush.bf16.xpose.msra.mxu0 %v1710
      %1728 = vmatpush.bf16.xpose.msra.mxu0 %v1709
      %1729 = vmatpush.bf16.xpose.msra.mxu0 %v1708
      %1730 = vmatpush.bf16.xpose.msra.mxu0 %v1707
      %1731 = vmatmul.bf16.gmra.mxu0 %v1307
      %v1732 = vpop.f32.mrf.mxu0
      %v1733 = vadd.f32 0.0, %v1732
      %v1734 = vpop.f32.mrf.mxu0
      %1735 = vdwg.mxu0
      %v1752 = vunpack.c.l.b16 %v1193
      %v1753 = vunpack.c.l.b16 %v1194
      %v1754 = vunpack.c.l.b16 %v1195
      %v1755 = vunpack.c.l.b16 %v1196
      %v1756 = vunpack.c.l.b16 %v1197
      %v1757 = vunpack.c.l.b16 %v1198
      %v1758 = vunpack.c.l.b16 %v1199
      %v1759 = vunpack.c.l.b16 %v1200
      %v1760 = vunpack.c.l.b16 %v1201
      %v1761 = vunpack.c.l.b16 %v1202
      %v1762 = vunpack.c.l.b16 %v1203
      %v1763 = vunpack.c.l.b16 %v1204
      %v1764 = vunpack.c.l.b16 %v1205
      %v1765 = vunpack.c.l.b16 %v1206
      %v1766 = vunpack.c.l.b16 %v1207
      %v1767 = vunpack.c.l.b16 %v1208
      %v1768 = vpack.c.b16 %v1753, %v1752
      %v1769 = vpack.c.b16 %v1755, %v1754
      %v1770 = vpack.c.b16 %v1757, %v1756
      %v1771 = vpack.c.b16 %v1759, %v1758
      %v1772 = vpack.c.b16 %v1761, %v1760
      %v1773 = vpack.c.b16 %v1763, %v1762
      %v1774 = vpack.c.b16 %v1765, %v1764
      %v1775 = vpack.c.b16 %v1767, %v1766
      %1784 = vmatpush.bf16.xpose.msra.mxu0 %v1775
      %1785 = vmatpush.bf16.xpose.msra.mxu0 %v1774
      %1786 = vmatpush.bf16.xpose.msra.mxu0 %v1773
      %1787 = vmatpush.bf16.xpose.msra.mxu0 %v1772
      %1788 = vmatpush.bf16.xpose.msra.mxu0 %v1771
      %1789 = vmatpush.bf16.xpose.msra.mxu0 %v1770
      %1790 = vmatpush.bf16.xpose.msra.mxu0 %v1769
      %1791 = vmatpush.bf16.xpose.msra.mxu0 %v1768
      %1792 = vmatmul.bf16.gmra.mxu0 %v1308
      %v1793 = vpop.f32.mrf.mxu0
      %v1794 = vadd.f32 0.0, %v1793
      %v1795 = vpop.f32.mrf.mxu0
      %1796 = vdwg.mxu0
      %v1797 = vld [vmem:[#allocation8] sm:$0xff]
      %vm1798 = vcmp.gt.f32.partialorder %v1797, 0.5
      %v1807 = vrot.slane %v1428, 7
      %vm1808 = vcmask 1041409
      %v1809 = vsel %vm1808, %v1807, %v1367
      %v1810 = vrot.slane %v1489, 6
      %vm1811 = vcmask 1042434
      %v1812 = vsel %vm1811, %v1810, %v1809
      %v1813 = vrot.slane %v1550, 5
      %vm1814 = vcmask 1043459
      %v1815 = vsel %vm1814, %v1813, %v1812
      %v1816 = vrot.slane %v1611, 4
      %vm1817 = vcmask 1044484
      %v1818 = vsel %vm1817, %v1816, %v1815
      %v1819 = vrot.slane %v1672, 3
      %vm1820 = vcmask 1045509
      %v1821 = vsel %vm1820, %v1819, %v1818
      %v1822 = vrot.slane %v1733, 2
      %vm1823 = vcmask 1046534
      %v1824 = vsel %vm1823, %v1822, %v1821
      %v1825 = vrot.slane %v1794, 1
      %vm1826 = vcmask 1047559
      %v1827 = vsel %vm1826, %v1825, %v1824
      %v1829 = vsel %vm1798, %v1827, -1e+09
      %1830 = vmax.xlane.f32.xlu0 %v1829
      %v1831 = vpop.xlane.xlu0 %1830
      %v1832 = vsub.f32 %v1829, %v1831
      %v1833 = vmul.f32 %v1832, 1.442695
      %v1834 = vpow.pop %v1833
      %1835 = vadd.xlane.f32.xlu0 %v1834
      %v1836 = vpop.xlane.xlu0 %1835
      %v1837 = vrcp.pop %v1836
      %v1838 = vmul.f32 %v1834, %v1837
      %v1840 = vrot.slane %v1838, 1
      %v1841 = vrot.slane %v1838, 2
      %v1842 = vrot.slane %v1838, 3
      %v1843 = vrot.slane %v1838, 4
      %v1844 = vrot.slane %v1838, 5
      %v1845 = vrot.slane %v1838, 6
      %v1846 = vrot.slane %v1838, 7
      %v1854 = vpack.c.bf16 %v1838, %v1838
      %v1855 = vpack.c.bf16 %v1840, %v1840
      %v1856 = vpack.c.bf16 %v1841, %v1841
      %v1857 = vpack.c.bf16 %v1842, %v1842
      %v1858 = vpack.c.bf16 %v1843, %v1843
      %v1859 = vpack.c.bf16 %v1844, %v1844
      %v1860 = vpack.c.bf16 %v1845, %v1845
      %v1861 = vpack.c.bf16 %v1846, %v1846
      %1862 = vmatpush.bf16.msra.mxu0 %v1348
      %1863 = vmatpush.bf16.msra.mxu0 %v1347
      %1864 = vmatpush.bf16.msra.mxu0 %v1346
      %1865 = vmatpush.bf16.msra.mxu0 %v1345
      %1866 = vmatpush.bf16.msra.mxu0 %v1344
      %1867 = vmatpush.bf16.msra.mxu0 %v1343
      %1868 = vmatpush.bf16.msra.mxu0 %v1342
      %1869 = vmatpush.bf16.msra.mxu0 %v1341
      %1870 = vmatmul.bf16.gmra.mxu0 %v1854
      %v1871 = vpop.f32.mrf.mxu0
      %v1872 = vadd.f32 0.0, %v1871
      %v1873 = vpop.f32.mrf.mxu0
      %1874 = vdwg.mxu0
      %1875 = vmatpush.bf16.msra.mxu0 %v1409
      %1876 = vmatpush.bf16.msra.mxu0 %v1408
      %1877 = vmatpush.bf16.msra.mxu0 %v1407
      %1878 = vmatpush.bf16.msra.mxu0 %v1406
      %1879 = vmatpush.bf16.msra.mxu0 %v1405
      %1880 = vmatpush.bf16.msra.mxu0 %v1404
      %1881 = vmatpush.bf16.msra.mxu0 %v1403
      %1882 = vmatpush.bf16.msra.mxu0 %v1402
      %1883 = vmatmul.bf16.gmra.mxu0 %v1855
      %v1884 = vpop.f32.mrf.mxu0
      %v1885 = vadd.f32 0.0, %v1884
      %v1886 = vpop.f32.mrf.mxu0
      %1887 = vdwg.mxu0
      %1888 = vmatpush.bf16.msra.mxu0 %v1470
      %1889 = vmatpush.bf16.msra.mxu0 %v1469
      %1890 = vmatpush.bf16.msra.mxu0 %v1468
      %1891 = vmatpush.bf16.msra.mxu0 %v1467
      %1892 = vmatpush.bf16.msra.mxu0 %v1466
      %1893 = vmatpush.bf16.msra.mxu0 %v1465
      %1894 = vmatpush.bf16.msra.mxu0 %v1464
      %1895 = vmatpush.bf16.msra.mxu0 %v1463
      %1896 = vmatmul.bf16.gmra.mxu0 %v1856
      %v1897 = vpop.f32.mrf.mxu0
      %v1898 = vadd.f32 0.0, %v1897
      %v1899 = vpop.f32.mrf.mxu0
      %1900 = vdwg.mxu0
      %1901 = vmatpush.bf16.msra.mxu0 %v1531
      %1902 = vmatpush.bf16.msra.mxu0 %v1530
      %1903 = vmatpush.bf16.msra.mxu0 %v1529
      %1904 = vmatpush.bf16.msra.mxu0 %v1528
      %1905 = vmatpush.bf16.msra.mxu0 %v1527
      %1906 = vmatpush.bf16.msra.mxu0 %v1526
      %1907 = vmatpush.bf16.msra.mxu0 %v1525
      %1908 = vmatpush.bf16.msra.mxu0 %v1524
      %1909 = vmatmul.bf16.gmra.mxu0 %v1857
      %v1910 = vpop.f32.mrf.mxu0
      %v1911 = vadd.f32 0.0, %v1910
      %v1912 = vpop.f32.mrf.mxu0
      %1913 = vdwg.mxu0
      %1914 = vmatpush.bf16.msra.mxu0 %v1592
      %1915 = vmatpush.bf16.msra.mxu0 %v1591
      %1916 = vmatpush.bf16.msra.mxu0 %v1590
      %1917 = vmatpush.bf16.msra.mxu0 %v1589
      %1918 = vmatpush.bf16.msra.mxu0 %v1588
      %1919 = vmatpush.bf16.msra.mxu0 %v1587
      %1920 = vmatpush.bf16.msra.mxu0 %v1586
      %1921 = vmatpush.bf16.msra.mxu0 %v1585
      %1922 = vmatmul.bf16.gmra.mxu0 %v1858
      %v1923 = vpop.f32.mrf.mxu0
      %v1924 = vadd.f32 0.0, %v1923
      %v1925 = vpop.f32.mrf.mxu0
      %1926 = vdwg.mxu0
      %1927 = vmatpush.bf16.msra.mxu0 %v1653
      %1928 = vmatpush.bf16.msra.mxu0 %v1652
      %1929 = vmatpush.bf16.msra.mxu0 %v1651
      %1930 = vmatpush.bf16.msra.mxu0 %v1650
      %1931 = vmatpush.bf16.msra.mxu0 %v1649
      %1932 = vmatpush.bf16.msra.mxu0 %v1648
      %1933 = vmatpush.bf16.msra.mxu0 %v1647
      %1934 = vmatpush.bf16.msra.mxu0 %v1646
      %1935 = vmatmul.bf16.gmra.mxu0 %v1859
      %v1936 = vpop.f32.mrf.mxu0
      %v1937 = vadd.f32 0.0, %v1936
      %v1938 = vpop.f32.mrf.mxu0
      %1939 = vdwg.mxu0
      %1940 = vmatpush.bf16.msra.mxu0 %v1714
      %1941 = vmatpush.bf16.msra.mxu0 %v1713
      %1942 = vmatpush.bf16.msra.mxu0 %v1712
      %1943 = vmatpush.bf16.msra.mxu0 %v1711
      %1944 = vmatpush.bf16.msra.mxu0 %v1710
      %1945 = vmatpush.bf16.msra.mxu0 %v1709
      %1946 = vmatpush.bf16.msra.mxu0 %v1708
      %1947 = vmatpush.bf16.msra.mxu0 %v1707
      %1948 = vmatmul.bf16.gmra.mxu0 %v1860
      %v1949 = vpop.f32.mrf.mxu0
      %v1950 = vadd.f32 0.0, %v1949
      %v1951 = vpop.f32.mrf.mxu0
      %1952 = vdwg.mxu0
      %1953 = vmatpush.bf16.msra.mxu0 %v1775
      %1954 = vmatpush.bf16.msra.mxu0 %v1774
      %1955 = vmatpush.bf16.msra.mxu0 %v1773
      %1956 = vmatpush.bf16.msra.mxu0 %v1772
      %1957 = vmatpush.bf16.msra.mxu0 %v1771
      %1958 = vmatpush.bf16.msra.mxu0 %v1770
      %1959 = vmatpush.bf16.msra.mxu0 %v1769
      %1960 = vmatpush.bf16.msra.mxu0 %v1768
      %1961 = vmatmul.bf16.gmra.mxu0 %v1861
      %v1962 = vpop.f32.mrf.mxu0
      %v1963 = vadd.f32 0.0, %v1962
      %v1964 = vpop.f32.mrf.mxu0
      %1965 = vdwg.mxu0
      %v1966 = vpack.c.bf16 %v1872, %v1872
      %v1967 = vpack.c.bf16 %v1885, %v1885
      %v1968 = vpack.c.bf16 %v1898, %v1898
      %v1969 = vpack.c.bf16 %v1911, %v1911
      %v1970 = vpack.c.bf16 %v1924, %v1924
      %v1971 = vpack.c.bf16 %v1937, %v1937
      %v1972 = vpack.c.bf16 %v1950, %v1950
      %v1973 = vpack.c.bf16 %v1963, %v1963
      %v1974 = vld [vmem:[#allocation16] sm:$0xf]
      %v1975 = vld [vmem:[#allocation16 + $0x4] sm:$0xf]
      %v1976 = vld [vmem:[#allocation16 + $0x8] sm:$0xf]
      %v1977 = vld [vmem:[#allocation16 + $0xc] sm:$0xf]
      %v1978 = vld [vmem:[#allocation16 + $0x10] sm:$0xf]
      %v1979 = vld [vmem:[#allocation16 + $0x14] sm:$0xf]
      %v1980 = vld [vmem:[#allocation16 + $0x18] sm:$0xf]
      %v1981 = vld [vmem:[#allocation16 + $0x1c] sm:$0xf]
      %v1982 = vld [vmem:[#allocation16 + $0x20] sm:$0xf]
      %v1983 = vld [vmem:[#allocation16 + $0x24] sm:$0xf]
      %v1984 = vld [vmem:[#allocation16 + $0x28] sm:$0xf]
      %v1985 = vld [vmem:[#allocation16 + $0x2c] sm:$0xf]
      %v1986 = vld [vmem:[#allocation16 + $0x30] sm:$0xf]
      %v1987 = vld [vmem:[#allocation16 + $0x34] sm:$0xf]
      %v1988 = vld [vmem:[#allocation16 + $0x38] sm:$0xf]
      %v1989 = vld [vmem:[#allocation16 + $0x3c] sm:$0xf]
      %v1998 = vunpack.c.l.b16 %v1966
      %v1999 = vunpack.c.l.b16 %v1967
      %v2000 = vunpack.c.l.b16 %v1968
      %v2001 = vunpack.c.l.b16 %v1969
      %v2002 = vunpack.c.l.b16 %v1970
      %v2003 = vunpack.c.l.b16 %v1971
      %v2004 = vunpack.c.l.b16 %v1972
      %v2005 = vunpack.c.l.b16 %v1973
      %v2006 = vrot.slane %v1999, 7
      %v2007 = vsel %vm1808, %v2006, %v1998
      %v2008 = vrot.slane %v2000, 6
      %v2009 = vsel %vm1811, %v2008, %v2007
      %v2010 = vrot.slane %v2001, 5
      %v2011 = vsel %vm1814, %v2010, %v2009
      %v2012 = vrot.slane %v2002, 4
      %v2013 = vsel %vm1817, %v2012, %v2011
      %v2014 = vrot.slane %v2003, 3
      %v2015 = vsel %vm1820, %v2014, %v2013
      %v2016 = vrot.slane %v2004, 2
      %v2017 = vsel %vm1823, %v2016, %v2015
      %v2018 = vrot.slane %v2005, 1
      %v2019 = vsel %vm1826, %v2018, %v2017
      %v2020 = vpack.c.b16 %v2019, %v2019
      %v2038 = vunpack.c.l.b16 %v1974
      %v2039 = vunpack.c.l.b16 %v1975
      %v2040 = vunpack.c.l.b16 %v1976
      %v2041 = vunpack.c.l.b16 %v1977
      %v2042 = vunpack.c.l.b16 %v1978
      %v2043 = vunpack.c.l.b16 %v1979
      %v2044 = vunpack.c.l.b16 %v1980
      %v2045 = vunpack.c.l.b16 %v1981
      %v2046 = vunpack.c.l.b16 %v1982
      %v2047 = vunpack.c.l.b16 %v1983
      %v2048 = vunpack.c.l.b16 %v1984
      %v2049 = vunpack.c.l.b16 %v1985
      %v2050 = vunpack.c.l.b16 %v1986
      %v2051 = vunpack.c.l.b16 %v1987
      %v2052 = vunpack.c.l.b16 %v1988
      %v2053 = vunpack.c.l.b16 %v1989
      %v2054 = vpack.c.b16 %v2039, %v2038
      %v2055 = vpack.c.b16 %v2041, %v2040
      %v2056 = vpack.c.b16 %v2043, %v2042
      %v2057 = vpack.c.b16 %v2045, %v2044
      %v2058 = vpack.c.b16 %v2047, %v2046
      %v2059 = vpack.c.b16 %v2049, %v2048
      %v2060 = vpack.c.b16 %v2051, %v2050
      %v2061 = vpack.c.b16 %v2053, %v2052
      %2070 = vmatpush.bf16.msra.mxu0 %v2061
      %2071 = vmatpush.bf16.msra.mxu0 %v2060
      %2072 = vmatpush.bf16.msra.mxu0 %v2059
      %2073 = vmatpush.bf16.msra.mxu0 %v2058
      %2074 = vmatpush.bf16.msra.mxu0 %v2057
      %2075 = vmatpush.bf16.msra.mxu0 %v2056
      %2076 = vmatpush.bf16.msra.mxu0 %v2055
      %2077 = vmatpush.bf16.msra.mxu0 %v2054
      %2078 = vmatmul.bf16.gmra.mxu0 %v2020
      %v2079 = vpop.f32.mrf.mxu0
      %v2080 = vadd.f32 0.0, %v2079
      %v2081 = vpop.f32.mrf.mxu0
      %2082 = vdwg.mxu0
      %v2083 = vpack.c.bf16 %v2080, %v2080
      %2084 = vst [vmem:[#allocation2 + $0x8] sm:$0xf] %v2083
      %v2085 = vld [vmem:[#allocation2 + $0x4] sm:$0xff]
      %v2086 = vld [vmem:[#allocation17] sm:$0xf]
      %v2087 = vld [vmem:[#allocation17 + $0x4] sm:$0xf]
      %v2088 = vld [vmem:[#allocation17 + $0x8] sm:$0xf]
      %v2089 = vld [vmem:[#allocation17 + $0xc] sm:$0xf]
      %v2090 = vld [vmem:[#allocation17 + $0x10] sm:$0xf]
      %v2091 = vld [vmem:[#allocation17 + $0x14] sm:$0xf]
      %v2092 = vld [vmem:[#allocation17 + $0x18] sm:$0xf]
      %v2093 = vld [vmem:[#allocation17 + $0x1c] sm:$0xf]
      %v2094 = vld [vmem:[#allocation17 + $0x20] sm:$0xf]
      %v2095 = vld [vmem:[#allocation17 + $0x24] sm:$0xf]
      %v2096 = vld [vmem:[#allocation17 + $0x28] sm:$0xf]
      %v2097 = vld [vmem:[#allocation17 + $0x2c] sm:$0xf]
      %v2098 = vld [vmem:[#allocation17 + $0x30] sm:$0xf]
      %v2099 = vld [vmem:[#allocation17 + $0x34] sm:$0xf]
      %v2100 = vld [vmem:[#allocation17 + $0x38] sm:$0xf]
      %v2101 = vld [vmem:[#allocation17 + $0x3c] sm:$0xf]
      %v2102 = vld [vmem:[#allocation17 + $0x40] sm:$0xf]
      %v2103 = vld [vmem:[#allocation17 + $0x44] sm:$0xf]
      %v2104 = vld [vmem:[#allocation17 + $0x48] sm:$0xf]
      %v2105 = vld [vmem:[#allocation17 + $0x4c] sm:$0xf]
      %v2106 = vld [vmem:[#allocation17 + $0x50] sm:$0xf]
      %v2107 = vld [vmem:[#allocation17 + $0x54] sm:$0xf]
      %v2108 = vld [vmem:[#allocation17 + $0x58] sm:$0xf]
      %v2109 = vld [vmem:[#allocation17 + $0x5c] sm:$0xf]
      %v2110 = vld [vmem:[#allocation17 + $0x60] sm:$0xf]
      %v2111 = vld [vmem:[#allocation17 + $0x64] sm:$0xf]
      %v2112 = vld [vmem:[#allocation17 + $0x68] sm:$0xf]
      %v2113 = vld [vmem:[#allocation17 + $0x6c] sm:$0xf]
      %v2114 = vld [vmem:[#allocation17 + $0x70] sm:$0xf]
      %v2115 = vld [vmem:[#allocation17 + $0x74] sm:$0xf]
      %v2116 = vld [vmem:[#allocation17 + $0x78] sm:$0xf]
      %v2117 = vld [vmem:[#allocation17 + $0x7c] sm:$0xf]
      %v2118 = vld [vmem:[%s8] sm:$0x1]
      %v2120 = vperm.slane %v2118, 0
      %v2123 = vunpack.c.l.b16 %v2085
      %v2124 = vunpack.c.h.b16 %v2085
      %v2125 = vpack.c.b16 %v2123, %v2123
      %v2126 = vpack.c.b16 %v2124, %v2124
      %v2161 = vunpack.c.l.b16 %v2086
      %v2162 = vunpack.c.l.b16 %v2087
      %v2163 = vunpack.c.l.b16 %v2088
      %v2164 = vunpack.c.l.b16 %v2089
      %v2165 = vunpack.c.l.b16 %v2090
      %v2166 = vunpack.c.l.b16 %v2091
      %v2167 = vunpack.c.l.b16 %v2092
      %v2168 = vunpack.c.l.b16 %v2093
      %v2169 = vunpack.c.l.b16 %v2094
      %v2170 = vunpack.c.l.b16 %v2095
      %v2171 = vunpack.c.l.b16 %v2096
      %v2172 = vunpack.c.l.b16 %v2097
      %v2173 = vunpack.c.l.b16 %v2098
      %v2174 = vunpack.c.l.b16 %v2099
      %v2175 = vunpack.c.l.b16 %v2100
      %v2176 = vunpack.c.l.b16 %v2101
      %v2177 = vunpack.c.l.b16 %v2102
      %v2178 = vunpack.c.l.b16 %v2103
      %v2179 = vunpack.c.l.b16 %v2104
      %v2180 = vunpack.c.l.b16 %v2105
      %v2181 = vunpack.c.l.b16 %v2106
      %v2182 = vunpack.c.l.b16 %v2107
      %v2183 = vunpack.c.l.b16 %v2108
      %v2184 = vunpack.c.l.b16 %v2109
      %v2185 = vunpack.c.l.b16 %v2110
      %v2186 = vunpack.c.l.b16 %v2111
      %v2187 = vunpack.c.l.b16 %v2112
      %v2188 = vunpack.c.l.b16 %v2113
      %v2189 = vunpack.c.l.b16 %v2114
      %v2190 = vunpack.c.l.b16 %v2115
      %v2191 = vunpack.c.l.b16 %v2116
      %v2192 = vunpack.c.l.b16 %v2117
      %v2193 = vpack.c.b16 %v2162, %v2161
      %v2194 = vpack.c.b16 %v2164, %v2163
      %v2195 = vpack.c.b16 %v2166, %v2165
      %v2196 = vpack.c.b16 %v2168, %v2167
      %v2197 = vpack.c.b16 %v2170, %v2169
      %v2198 = vpack.c.b16 %v2172, %v2171
      %v2199 = vpack.c.b16 %v2174, %v2173
      %v2200 = vpack.c.b16 %v2176, %v2175
      %v2201 = vpack.c.b16 %v2178, %v2177
      %v2202 = vpack.c.b16 %v2180, %v2179
      %v2203 = vpack.c.b16 %v2182, %v2181
      %v2204 = vpack.c.b16 %v2184, %v2183
      %v2205 = vpack.c.b16 %v2186, %v2185
      %v2206 = vpack.c.b16 %v2188, %v2187
      %v2207 = vpack.c.b16 %v2190, %v2189
      %v2208 = vpack.c.b16 %v2192, %v2191
      %2225 = vmatpush.bf16.msra.mxu0 %v2200
      %2226 = vmatpush.bf16.msra.mxu0 %v2199
      %2227 = vmatpush.bf16.msra.mxu0 %v2198
      %2228 = vmatpush.bf16.msra.mxu0 %v2197
      %2229 = vmatpush.bf16.msra.mxu0 %v2196
      %2230 = vmatpush.bf16.msra.mxu0 %v2195
      %2231 = vmatpush.bf16.msra.mxu0 %v2194
      %2232 = vmatpush.bf16.msra.mxu0 %v2193
      %2233 = vmatmul.bf16.gmra.mxu0 %v2125
      %v2234 = vpop.f32.mrf.mxu0
      %v2235 = vadd.f32 %v2120, %v2234
      %v2236 = vpop.f32.mrf.mxu0
      %2237 = vdwg.mxu0
      %2238 = vmatpush.bf16.msra.mxu0 %v2208
      %2239 = vmatpush.bf16.msra.mxu0 %v2207
      %2240 = vmatpush.bf16.msra.mxu0 %v2206
      %2241 = vmatpush.bf16.msra.mxu0 %v2205
      %2242 = vmatpush.bf16.msra.mxu0 %v2204
      %2243 = vmatpush.bf16.msra.mxu0 %v2203
      %2244 = vmatpush.bf16.msra.mxu0 %v2202
      %2245 = vmatpush.bf16.msra.mxu0 %v2201
      %2246 = vmatmul.bf16.gmra.mxu0 %v2126
      %v2247 = vpop.f32.mrf.mxu0
      %v2248 = vadd.f32 %v2235, %v2247
      %v2249 = vpop.f32.mrf.mxu0
      %2250 = vdwg.mxu0
      %s2251 = smul.u32 %s174, 8
      %s2252 = scalar_lea.vmem [#allocation19], %s2251
      %2253 = vst [vmem:[%s2252] sm:$0xff] %v2248
      %s2254 = scalar_lea.vmem [#allocation20], %s2251
      %2255 = vst [vmem:[%s2254] sm:$0xff] %v1838
      %2256 = vmax.xlane.f32.xlu0 %v2248
      %v2257 = vpop.xlane.xlu0 %2256
      %v2258 = vlaneseq
      %v2259 = vand.u32 %v2258, 127
      %vm2260 = vcmp.eq.f32.partialorder %v2248, %v2257
      %v2261 = vsel %vm2260, %v2259, 128
      %v2262 = vand.u32 %v2261, 65535
      %v2263 = vshra.s32 %v2261, 16
      %v2264 = vcvt.s32.f32 %v2262
      %v2265 = vcvt.s32.f32 %v2263
      %2266 = vmin.xlane.f32.xlu0 %v2265
      %v2267 = vpop.xlane.xlu0 %2266
      %vm2268 = vcmp.eq.f32.partialorder %v2265, %v2267
      %v2269 = vsel %vm2268, %v2264, inf
      %2270 = vmin.xlane.f32.xlu0 %v2269
      %v2271 = vpop.xlane.xlu0 %2270
      %v2272 = vcvt.f32.s32 %v2271
      %v2273 = vcvt.f32.s32 %v2267
      %v2274 = vshll.u32 %v2273, 16
      %v2275 = vadd.s32 %v2274, %v2272
      %vm2276 = vcmp.eq.s32.totalorder %v2259, %v2275
      %v2277 = vsel %vm2276, 1, 0
      %v2278 = vcvt.s32.f32 %v2277
      %v2279 = vpack.c.bf16 %v2278, %v2278
      %2280 = vst [vmem:[#allocation4] sm:$0xf] %v2279
    $region82: #{tpu_custom_call.1} parent=1 // loop_footer
      %s178 = sadd.s32 1, %s174
    $region83: #{tpu_custom_call.1} parent=1 // loop_footer_branch
      %173 = sbr.rel target = $region79
    $region84: #{tpu_custom_call.1} parent=1 // loop_exit
      _
    %v2281 = vld [vmem:[#allocation19] sm:$0xff]
    %v2282 = vld [vmem:[#allocation19 + $0x8] sm:$0xff]
    %v2283 = vld [vmem:[#allocation19 + $0x10] sm:$0xff]
    %v2284 = vld [vmem:[#allocation19 + $0x18] sm:$0xff]
    %v2285 = vld [vmem:[#allocation19 + $0x20] sm:$0xff]
    %v2286 = vld [vmem:[#allocation19 + $0x28] sm:$0xff]
    %v2287 = vld [vmem:[#allocation19 + $0x30] sm:$0xff]
    %v2288 = vld [vmem:[#allocation19 + $0x38] sm:$0xff]
    %2289 = vmax.xlane.f32.xlu0 %v2281
    %v2290 = vpop.xlane.xlu0 %2289
    %2291 = vmax.xlane.f32.xlu0 %v2282
    %v2292 = vpop.xlane.xlu0 %2291
    %2293 = vmax.xlane.f32.xlu0 %v2283
    %v2294 = vpop.xlane.xlu0 %2293
    %2295 = vmax.xlane.f32.xlu0 %v2284
    %v2296 = vpop.xlane.xlu0 %2295
    %2297 = vmax.xlane.f32.xlu0 %v2285
    %v2298 = vpop.xlane.xlu0 %2297
    %2299 = vmax.xlane.f32.xlu0 %v2286
    %v2300 = vpop.xlane.xlu0 %2299
    %2301 = vmax.xlane.f32.xlu0 %v2287
    %v2302 = vpop.xlane.xlu0 %2301
    %2303 = vmax.xlane.f32.xlu0 %v2288
    %v2304 = vpop.xlane.xlu0 %2303
    %v2305 = vlaneseq
    %v2306 = vand.u32 %v2305, 127
    %vm2307 = vcmp.eq.f32.partialorder %v2281, %v2290
    %vm2308 = vcmp.eq.f32.partialorder %v2282, %v2292
    %vm2309 = vcmp.eq.f32.partialorder %v2283, %v2294
    %vm2310 = vcmp.eq.f32.partialorder %v2284, %v2296
    %vm2311 = vcmp.eq.f32.partialorder %v2285, %v2298
    %vm2312 = vcmp.eq.f32.partialorder %v2286, %v2300
    %vm2313 = vcmp.eq.f32.partialorder %v2287, %v2302
    %vm2314 = vcmp.eq.f32.partialorder %v2288, %v2304
    %v2315 = vsel %vm2307, %v2306, 128
    %v2316 = vsel %vm2308, %v2306, 128
    %v2317 = vsel %vm2309, %v2306, 128
    %v2318 = vsel %vm2310, %v2306, 128
    %v2319 = vsel %vm2311, %v2306, 128
    %v2320 = vsel %vm2312, %v2306, 128
    %v2321 = vsel %vm2313, %v2306, 128
    %v2322 = vsel %vm2314, %v2306, 128
    %v2323 = vand.u32 %v2315, 65535
    %v2324 = vshra.s32 %v2315, 16
    %v2325 = vcvt.s32.f32 %v2323
    %v2326 = vcvt.s32.f32 %v2324
    %2327 = vmin.xlane.f32.xlu0 %v2326
    %v2328 = vpop.xlane.xlu0 %2327
    %vm2329 = vcmp.eq.f32.partialorder %v2326, %v2328
    %v2330 = vsel %vm2329, %v2325, inf
    %2331 = vmin.xlane.f32.xlu0 %v2330
    %v2332 = vpop.xlane.xlu0 %2331
    %v2333 = vcvt.f32.s32 %v2332
    %v2334 = vcvt.f32.s32 %v2328
    %v2335 = vshll.u32 %v2334, 16
    %v2336 = vadd.s32 %v2335, %v2333
    %v2337 = vand.u32 %v2316, 65535
    %v2338 = vshra.s32 %v2316, 16
    %v2339 = vcvt.s32.f32 %v2337
    %v2340 = vcvt.s32.f32 %v2338
    %2341 = vmin.xlane.f32.xlu0 %v2340
    %v2342 = vpop.xlane.xlu0 %2341
    %vm2343 = vcmp.eq.f32.partialorder %v2340, %v2342
    %v2344 = vsel %vm2343, %v2339, inf
    %2345 = vmin.xlane.f32.xlu0 %v2344
    %v2346 = vpop.xlane.xlu0 %2345
    %v2347 = vcvt.f32.s32 %v2346
    %v2348 = vcvt.f32.s32 %v2342
    %v2349 = vshll.u32 %v2348, 16
    %v2350 = vadd.s32 %v2349, %v2347
    %v2351 = vand.u32 %v2317, 65535
    %v2352 = vshra.s32 %v2317, 16
    %v2353 = vcvt.s32.f32 %v2351
    %v2354 = vcvt.s32.f32 %v2352
    %2355 = vmin.xlane.f32.xlu0 %v2354
    %v2356 = vpop.xlane.xlu0 %2355
    %vm2357 = vcmp.eq.f32.partialorder %v2354, %v2356
    %v2358 = vsel %vm2357, %v2353, inf
    %2359 = vmin.xlane.f32.xlu0 %v2358
    %v2360 = vpop.xlane.xlu0 %2359
    %v2361 = vcvt.f32.s32 %v2360
    %v2362 = vcvt.f32.s32 %v2356
    %v2363 = vshll.u32 %v2362, 16
    %v2364 = vadd.s32 %v2363, %v2361
    %v2365 = vand.u32 %v2318, 65535
    %v2366 = vshra.s32 %v2318, 16
    %v2367 = vcvt.s32.f32 %v2365
    %v2368 = vcvt.s32.f32 %v2366
    %2369 = vmin.xlane.f32.xlu0 %v2368
    %v2370 = vpop.xlane.xlu0 %2369
    %vm2371 = vcmp.eq.f32.partialorder %v2368, %v2370
    %v2372 = vsel %vm2371, %v2367, inf
    %2373 = vmin.xlane.f32.xlu0 %v2372
    %v2374 = vpop.xlane.xlu0 %2373
    %v2375 = vcvt.f32.s32 %v2374
    %v2376 = vcvt.f32.s32 %v2370
    %v2377 = vshll.u32 %v2376, 16
    %v2378 = vadd.s32 %v2377, %v2375
    %v2379 = vand.u32 %v2319, 65535
    %v2380 = vshra.s32 %v2319, 16
    %v2381 = vcvt.s32.f32 %v2379
    %v2382 = vcvt.s32.f32 %v2380
    %2383 = vmin.xlane.f32.xlu0 %v2382
    %v2384 = vpop.xlane.xlu0 %2383
    %vm2385 = vcmp.eq.f32.partialorder %v2382, %v2384
    %v2386 = vsel %vm2385, %v2381, inf
    %2387 = vmin.xlane.f32.xlu0 %v2386
    %v2388 = vpop.xlane.xlu0 %2387
    %v2389 = vcvt.f32.s32 %v2388
    %v2390 = vcvt.f32.s32 %v2384
    %v2391 = vshll.u32 %v2390, 16
    %v2392 = vadd.s32 %v2391, %v2389
    %v2393 = vand.u32 %v2320, 65535
    %v2394 = vshra.s32 %v2320, 16
    %v2395 = vcvt.s32.f32 %v2393
    %v2396 = vcvt.s32.f32 %v2394
    %2397 = vmin.xlane.f32.xlu0 %v2396
    %v2398 = vpop.xlane.xlu0 %2397
    %vm2399 = vcmp.eq.f32.partialorder %v2396, %v2398
    %v2400 = vsel %vm2399, %v2395, inf
    %2401 = vmin.xlane.f32.xlu0 %v2400
    %v2402 = vpop.xlane.xlu0 %2401
    %v2403 = vcvt.f32.s32 %v2402
    %v2404 = vcvt.f32.s32 %v2398
    %v2405 = vshll.u32 %v2404, 16
    %v2406 = vadd.s32 %v2405, %v2403
    %v2407 = vand.u32 %v2321, 65535
    %v2408 = vshra.s32 %v2321, 16
    %v2409 = vcvt.s32.f32 %v2407
    %v2410 = vcvt.s32.f32 %v2408
    %2411 = vmin.xlane.f32.xlu0 %v2410
    %v2412 = vpop.xlane.xlu0 %2411
    %vm2413 = vcmp.eq.f32.partialorder %v2410, %v2412
    %v2414 = vsel %vm2413, %v2409, inf
    %2415 = vmin.xlane.f32.xlu0 %v2414
    %v2416 = vpop.xlane.xlu0 %2415
    %v2417 = vcvt.f32.s32 %v2416
    %v2418 = vcvt.f32.s32 %v2412
    %v2419 = vshll.u32 %v2418, 16
    %v2420 = vadd.s32 %v2419, %v2417
    %v2421 = vand.u32 %v2322, 65535
    %v2422 = vshra.s32 %v2322, 16
    %v2423 = vcvt.s32.f32 %v2421
    %v2424 = vcvt.s32.f32 %v2422
    %2425 = vmin.xlane.f32.xlu0 %v2424
    %v2426 = vpop.xlane.xlu0 %2425
    %vm2427 = vcmp.eq.f32.partialorder %v2424, %v2426
    %v2428 = vsel %vm2427, %v2423, inf
    %2429 = vmin.xlane.f32.xlu0 %v2428
    %v2430 = vpop.xlane.xlu0 %2429
    %v2431 = vcvt.f32.s32 %v2430
    %v2432 = vcvt.f32.s32 %v2426
    %v2433 = vshll.u32 %v2432, 16
    %v2434 = vadd.s32 %v2433, %v2431
    %v2435 = vsub.f32 %v2281, %v2290
    %v2436 = vsub.f32 %v2282, %v2292
    %v2437 = vsub.f32 %v2283, %v2294
    %v2438 = vsub.f32 %v2284, %v2296
    %v2439 = vsub.f32 %v2285, %v2298
    %v2440 = vsub.f32 %v2286, %v2300
    %v2441 = vsub.f32 %v2287, %v2302
    %v2442 = vsub.f32 %v2288, %v2304
    %v2443 = vmul.f32 %v2435, 1.442695
    %v2444 = vpow.pop %v2443
    %v2445 = vmul.f32 %v2436, 1.442695
    %v2446 = vpow.pop %v2445
    %v2447 = vmul.f32 %v2437, 1.442695
    %v2448 = vpow.pop %v2447
    %v2449 = vmul.f32 %v2438, 1.442695
    %v2450 = vpow.pop %v2449
    %v2451 = vmul.f32 %v2439, 1.442695
    %v2452 = vpow.pop %v2451
    %v2453 = vmul.f32 %v2440, 1.442695
    %v2454 = vpow.pop %v2453
    %v2455 = vmul.f32 %v2441, 1.442695
    %v2456 = vpow.pop %v2455
    %v2457 = vmul.f32 %v2442, 1.442695
    %v2458 = vpow.pop %v2457
    %2459 = vadd.xlane.f32.xlu0 %v2444
    %v2460 = vpop.xlane.xlu0 %2459
    %2461 = vadd.xlane.f32.xlu0 %v2446
    %v2462 = vpop.xlane.xlu0 %2461
    %2463 = vadd.xlane.f32.xlu0 %v2448
    %v2464 = vpop.xlane.xlu0 %2463
    %2465 = vadd.xlane.f32.xlu0 %v2450
    %v2466 = vpop.xlane.xlu0 %2465
    %2467 = vadd.xlane.f32.xlu0 %v2452
    %v2468 = vpop.xlane.xlu0 %2467
    %2469 = vadd.xlane.f32.xlu0 %v2454
    %v2470 = vpop.xlane.xlu0 %2469
    %2471 = vadd.xlane.f32.xlu0 %v2456
    %v2472 = vpop.xlane.xlu0 %2471
    %2473 = vadd.xlane.f32.xlu0 %v2458
    %v2474 = vpop.xlane.xlu0 %2473
    %v2475 = vlog2.pop %v2460
    %v2476 = vmul.f32 %v2475, 0.6931472
    %v2477 = vlog2.pop %v2462
    %v2478 = vmul.f32 %v2477, 0.6931472
    %v2479 = vlog2.pop %v2464
    %v2480 = vmul.f32 %v2479, 0.6931472
    %v2481 = vlog2.pop %v2466
    %v2482 = vmul.f32 %v2481, 0.6931472
    %v2483 = vlog2.pop %v2468
    %v2484 = vmul.f32 %v2483, 0.6931472
    %v2485 = vlog2.pop %v2470
    %v2486 = vmul.f32 %v2485, 0.6931472
    %v2487 = vlog2.pop %v2472
    %v2488 = vmul.f32 %v2487, 0.6931472
    %v2489 = vlog2.pop %v2474
    %v2490 = vmul.f32 %v2489, 0.6931472
    %v2491 = vsub.f32 0.0, %v2476
    %v2492 = vsub.f32 0.0, %v2478
    %v2493 = vsub.f32 0.0, %v2480
    %v2494 = vsub.f32 0.0, %v2482
    %v2495 = vsub.f32 0.0, %v2484
    %v2496 = vsub.f32 0.0, %v2486
    %v2497 = vsub.f32 0.0, %v2488
    %v2498 = vsub.f32 0.0, %v2490
    %v2499 = vperm.slane %v2336, %v2306
    %v2500 = vperm.slane %v2350, %v2306
    %v2501 = vperm.slane %v2364, %v2306
    %v2502 = vperm.slane %v2378, %v2306
    %v2503 = vperm.slane %v2392, %v2306
    %v2504 = vperm.slane %v2406, %v2306
    %v2505 = vperm.slane %v2420, %v2306
    %v2506 = vperm.slane %v2434, %v2306
    %vm2507 = vcmask 1041409
    %v2508 = vsel %vm2507, %v2500, %v2499
    %vm2509 = vcmask 1042434
    %v2510 = vsel %vm2509, %v2501, %v2508
    %vm2511 = vcmask 1043459
    %v2512 = vsel %vm2511, %v2502, %v2510
    %vm2513 = vcmask 1044484
    %v2514 = vsel %vm2513, %v2503, %v2512
    %vm2515 = vcmask 1045509
    %v2516 = vsel %vm2515, %v2504, %v2514
    %vm2517 = vcmask 1046534
    %v2518 = vsel %vm2517, %v2505, %v2516
    %vm2519 = vcmask 1047559
    %v2520 = vsel %vm2519, %v2506, %v2518
    %2521 = vxpose.xlu0.b32.start [1/16] %v2520, 128
    %2522 = vxpose.xlu0.b32.cont [2/16] 0, 128
    %2523 = vxpose.xlu0.b32.cont [3/16] 0, 128
    %2524 = vxpose.xlu0.b32.cont [4/16] 0, 128
    %2525 = vxpose.xlu0.b32.cont [5/16] 0, 128
    %2526 = vxpose.xlu0.b32.cont [6/16] 0, 128
    %2527 = vxpose.xlu0.b32.cont [7/16] 0, 128
    %2528 = vxpose.xlu0.b32.cont [8/16] 0, 128
    %2529 = vxpose.xlu0.b32.cont [9/16] 0, 128
    %2530 = vxpose.xlu0.b32.cont [10/16] 0, 128
    %2531 = vxpose.xlu0.b32.cont [11/16] 0, 128
    %2532 = vxpose.xlu0.b32.cont [12/16] 0, 128
    %2533 = vxpose.xlu0.b32.cont [13/16] 0, 128
    %2534 = vxpose.xlu0.b32.cont [14/16] 0, 128
    %2535 = vxpose.xlu0.b32.cont [15/16] 0, 128
    %2536 = vxpose.xlu0.b32.end [16/16] 0, 128
    %v2537 = vpop.trf.xlu0
    %v2538 = vpop.trf.xlu0
    %v2539 = vpop.trf.xlu0
    %v2540 = vpop.trf.xlu0
    %v2541 = vpop.trf.xlu0
    %v2542 = vpop.trf.xlu0
    %v2543 = vpop.trf.xlu0
    %v2544 = vpop.trf.xlu0
    %v2545 = vpop.trf.xlu0
    %v2546 = vpop.trf.xlu0
    %v2547 = vpop.trf.xlu0
    %v2548 = vpop.trf.xlu0
    %v2549 = vpop.trf.xlu0
    %v2550 = vpop.trf.xlu0
    %v2551 = vpop.trf.xlu0
    %v2552 = vpop.trf.xlu0
    %vm2553 = vcmask 64512
    %2554 = vst.msk [vmem:[#allocation22] sm:$0xff] %vm2553, %v2537
    %v2563 = vperm.slane %v2491, %v2306
    %v2564 = vperm.slane %v2492, %v2306
    %v2565 = vperm.slane %v2493, %v2306
    %v2566 = vperm.slane %v2494, %v2306
    %v2567 = vperm.slane %v2495, %v2306
    %v2568 = vperm.slane %v2496, %v2306
    %v2569 = vperm.slane %v2497, %v2306
    %v2570 = vperm.slane %v2498, %v2306
    %v2571 = vsel %vm2507, %v2564, %v2563
    %v2572 = vsel %vm2509, %v2565, %v2571
    %v2573 = vsel %vm2511, %v2566, %v2572
    %v2574 = vsel %vm2513, %v2567, %v2573
    %v2575 = vsel %vm2515, %v2568, %v2574
    %v2576 = vsel %vm2517, %v2569, %v2575
    %v2577 = vsel %vm2519, %v2570, %v2576
    %2579 = vxpose.xlu0.b32.start [1/16] %v2577, 128
    %2580 = vxpose.xlu0.b32.cont [2/16] 0.0, 128
    %2581 = vxpose.xlu0.b32.cont [3/16] 0.0, 128
    %2582 = vxpose.xlu0.b32.cont [4/16] 0.0, 128
    %2583 = vxpose.xlu0.b32.cont [5/16] 0.0, 128
    %2584 = vxpose.xlu0.b32.cont [6/16] 0.0, 128
    %2585 = vxpose.xlu0.b32.cont [7/16] 0.0, 128
    %2586 = vxpose.xlu0.b32.cont [8/16] 0.0, 128
    %2587 = vxpose.xlu0.b32.cont [9/16] 0.0, 128
    %2588 = vxpose.xlu0.b32.cont [10/16] 0.0, 128
    %2589 = vxpose.xlu0.b32.cont [11/16] 0.0, 128
    %2590 = vxpose.xlu0.b32.cont [12/16] 0.0, 128
    %2591 = vxpose.xlu0.b32.cont [13/16] 0.0, 128
    %2592 = vxpose.xlu0.b32.cont [14/16] 0.0, 128
    %2593 = vxpose.xlu0.b32.cont [15/16] 0.0, 128
    %2594 = vxpose.xlu0.b32.end [16/16] 0.0, 128
    %v2595 = vpop.trf.xlu0
    %v2596 = vpop.trf.xlu0
    %v2597 = vpop.trf.xlu0
    %v2598 = vpop.trf.xlu0
    %v2599 = vpop.trf.xlu0
    %v2600 = vpop.trf.xlu0
    %v2601 = vpop.trf.xlu0
    %v2602 = vpop.trf.xlu0
    %v2603 = vpop.trf.xlu0
    %v2604 = vpop.trf.xlu0
    %v2605 = vpop.trf.xlu0
    %v2606 = vpop.trf.xlu0
    %v2607 = vpop.trf.xlu0
    %v2608 = vpop.trf.xlu0
    %v2609 = vpop.trf.xlu0
    %v2610 = vpop.trf.xlu0
    %2611 = vst.msk [vmem:[#allocation23] sm:$0xff] %vm2553, %v2595
    // Predicated region
    $region85: #{tpu_custom_call.1} parent=1 // pred_check
      _
    $region86: #{tpu_custom_call.1} parent=1 // pred_check_branch
      %2613 = sbr.rel (0) target = $region88
    $region87: #{tpu_custom_call.1} parent=1 // pred_region
      %2615 = vsyncadd [#allocation7], 0
      %s2616 = sshll.u32 [#allocation19], 4
      %s2617 = int_to_ptr.vmem [resolvable:$true] %s2616
      %s2618 = sshll.u32 %s10, 4
      %s2619 = int_to_ptr.hbm [resolvable:$true] %s2618
      %2624 = dma.vmem_to_hbm [thread:$0]  %s2617, 1024, %s2619, [#allocation7], 128, 128, 8
    $region88: #{tpu_custom_call.1} parent=1 // pred_fallthru
      _
    // Predicated region
    $region89: #{tpu_custom_call.1} parent=1 // pred_check
      _
    $region90: #{tpu_custom_call.1} parent=1 // pred_check_branch
      %2626 = sbr.rel (0) target = $region92
    $region91: #{tpu_custom_call.1} parent=1 // pred_region
      %2628 = vsyncadd [#allocation21], 0
      %s2629 = sshll.u32 [#allocation20], 4
      %s2630 = int_to_ptr.vmem [resolvable:$true] %s2629
      %s2631 = sshll.u32 %s11, 4
      %s2632 = int_to_ptr.hbm [resolvable:$true] %s2631
      %2637 = dma.vmem_to_hbm [thread:$0]  %s2630, 1024, %s2632, [#allocation21], 128, 128, 8
    $region92: #{tpu_custom_call.1} parent=1 // pred_fallthru
      _
    // Predicated region
    $region93: #{tpu_custom_call.1} parent=1 // pred_check
      _
    $region94: #{tpu_custom_call.1} parent=1 // pred_check_branch
      %2639 = sbr.rel (0) target = $region96
    $region95: #{tpu_custom_call.1} parent=1 // pred_region
      %2641 = vsyncadd [#allocation21], 0
      %s2643 = sshll.u32 [#allocation22], 4
      %s2644 = int_to_ptr.vmem [resolvable:$true] %s2643
      %s2645 = sshll.u32 %s12, 4
      %s2646 = int_to_ptr.hbm [resolvable:$true] %s2645
      %2648 = dma.vmem_to_hbm [thread:$0]  %s2644, 128, %s2646, [#allocation21]
    $region96: #{tpu_custom_call.1} parent=1 // pred_fallthru
      _
    // Predicated region
    $region97: #{tpu_custom_call.1} parent=1 // pred_check
      _
    $region98: #{tpu_custom_call.1} parent=1 // pred_check_branch
      %2650 = sbr.rel (0) target = $region100
    $region99: #{tpu_custom_call.1} parent=1 // pred_region
      %2652 = vsyncadd [#allocation24], 0
      %s2654 = sshll.u32 [#allocation23], 4
      %s2655 = int_to_ptr.vmem [resolvable:$true] %s2654
      %s2656 = sshll.u32 %s13, 4
      %s2657 = int_to_ptr.hbm [resolvable:$true] %s2656
      %2659 = dma.vmem_to_hbm [thread:$0]  %s2655, 128, %s2657, [#allocation24]
    $region100: #{tpu_custom_call.1} parent=1 // pred_fallthru
      _
    // Predicated region
    $region101: #{tpu_custom_call.1} parent=1 // pred_check
      _
    $region102: #{tpu_custom_call.1} parent=1 // pred_check_branch
      %2661 = sbr.rel (0) target = $region104
    $region103: #{tpu_custom_call.1} parent=1 // pred_region
      %2663 = dma.done [#allocation7], 1024
    $region104: #{tpu_custom_call.1} parent=1 // pred_fallthru
      _
    // Predicated region
    $region105: #{tpu_custom_call.1} parent=1 // pred_check
      _
    $region106: #{tpu_custom_call.1} parent=1 // pred_check_branch
      %2665 = sbr.rel (0) target = $region108
    $region107: #{tpu_custom_call.1} parent=1 // pred_region
      %2667 = dma.done [#allocation21], 1024
    $region108: #{tpu_custom_call.1} parent=1 // pred_fallthru
      _
    // Predicated region
    $region109: #{tpu_custom_call.1} parent=1 // pred_check
      _
    $region110: #{tpu_custom_call.1} parent=1 // pred_check_branch
      %2669 = sbr.rel (0) target = $region112
    $region111: #{tpu_custom_call.1} parent=1 // pred_region
      %2671 = dma.done [#allocation21], 128
    $region112: #{tpu_custom_call.1} parent=1 // pred_fallthru
      _
    // Predicated region
    $region113: #{tpu_custom_call.1} parent=1 // pred_check
      _
    $region114: #{tpu_custom_call.1} parent=1 // pred_check_branch
      %2673 = sbr.rel (0) target = $region116
    $region115: #{tpu_custom_call.1} parent=1 // pred_region
      %2675 = dma.done [#allocation24], 128
    $region116: #{tpu_custom_call.1} parent=1 // pred_fallthru
      _
    %2676 = vsyncpa [#allocation6], 1
    %2677 = vsyncpa [#allocation9], 1
    %2678 = vsyncpa [#allocation12], 1
    %2679 = vsyncpa [#allocation15], 1
    %2680 = vsyncpa [#allocation18], 1
    %2681 = vsyncpa [#allocation7], 1
    %2682 = vsyncpa [#allocation21], 1
    %2683 = vsyncpa [#allocation24], 1

</llo_original>
